<compile_context>
chip_gen: v7x
topology: tpu7x:2x2x1
jax: 0.10.0
libtpu: 0.0.40
codegen_flags: <defaults>
</compile_context>

<pallas_src>
import functools

import jax
import jax.numpy as jnp
from jax import lax
from jax.experimental import pallas as pl
from jax.experimental.pallas import tpu as pltpu

_MIB = 1024 * 1024


# ---------------------------------------------------------------------------
# Kernel 1: K/V projection with lane-dense (TS, D) stores
# ---------------------------------------------------------------------------
def _kv_proj_kernel(x_ref, wk_ref, bk_ref, wv_ref, bv_ref, k_ref, v_ref):
    x = x_ref[0].astype(wk_ref.dtype)                       # (TS, D) compute dtype
    k = jnp.dot(x, wk_ref[...], preferred_element_type=jnp.float32)
    v = jnp.dot(x, wv_ref[...], preferred_element_type=jnp.float32)
    # Heads stay packed along the lane axis -> fully dense (TS, D) stores.
    k_ref[0] = (k + bk_ref[0].astype(jnp.float32)).astype(k_ref.dtype)
    v_ref[0] = (v + bv_ref[0].astype(jnp.float32)).astype(v_ref.dtype)


# ---------------------------------------------------------------------------
# Kernel 2: fused Q projection + flash attention + output projection
# ---------------------------------------------------------------------------
def _flash_attn_kernel(x_ref, wq_ref, bq_ref, k_ref, v_ref, wout_ref, bout_ref,
                       o_ref, q_scr, m_scr, l_scr, acc_scr,
                       *, num_heads, head_dim):
    ki = pl.program_id(2)

    @pl.when(ki == 0)
    def _init():
        # Fused Q projection: Q never round-trips HBM (saves ~B*L*D traffic).
        # The softmax scale is pre-folded into wq/bq by the wrapper.
        xq = x_ref[0].astype(wq_ref.dtype)                  # (TQ, D)
        q = jnp.dot(xq, wq_ref[...], preferred_element_type=jnp.float32)
        q = (q + bq_ref[0].astype(jnp.float32)).astype(q_scr.dtype)
        for h in range(num_heads):                          # once per q tile
            q_scr[h] = q[:, h * head_dim:(h + 1) * head_dim]
        m_scr[...] = jnp.full(m_scr.shape, -jnp.inf, m_scr.dtype)
        l_scr[...] = jnp.zeros(l_scr.shape, l_scr.dtype)
        acc_scr[...] = jnp.zeros(acc_scr.shape, acc_scr.dtype)

    k = k_ref[0]                                            # (TK, D) compute dtype
    v = v_ref[0]
    # Static head loop: all per-head state lives in VMEM scratch so live ranges
    # stay bounded per iteration; a lax.fori_loop here would need dynamic-start
    # lane slicing of k/v, which is the riskier lowering path.
    for h in range(num_heads):
        lo = h * head_dim
        q_h = q_scr[h]                                      # (TQ, hd) address offset
        k_h = k[:, lo:lo + head_dim]                        # static lane slice
        v_h = v[:, lo:lo + head_dim]
        s = lax.dot_general(q_h, k_h, (((1,), (1,)), ((), ())),
                            preferred_element_type=jnp.float32)   # (TQ, TK) f32
        m_prev = m_scr[h]
        m_new = jnp.maximum(m_prev, jnp.max(s, axis=-1, keepdims=True))
        alpha = jnp.exp(m_prev - m_new)                     # (TQ, 1) f32, tiny
        # Single (TQ, TK)-sized exp stream, in the compute dtype (bf16 EUP on
        # v6e/v7x; lowers to the f32 path on v5e).
        p = jnp.exp((s - m_new).astype(q_h.dtype))
        l_scr[h] = alpha * l_scr[h] + jnp.sum(p.astype(jnp.float32),
                                              axis=-1, keepdims=True)
        acc_scr[h] = alpha * acc_scr[h] + jnp.dot(
            p.astype(v_h.dtype), v_h, preferred_element_type=jnp.float32)
        m_scr[h] = m_new
        # TODO(synk): for head_dim < 128 the P@V matmul fills only head_dim of
        # the 128 MXU output lanes; packing >=2 heads per output lane group
        # would require a block-diagonal P and is intentionally left out.

    @pl.when(ki == pl.num_programs(2) - 1)
    def _finalize():
        attn = jnp.concatenate(
            [acc_scr[h] * pl.reciprocal(l_scr[h], approx=True)
             for h in range(num_heads)], axis=-1)           # (TQ, D) f32
        attn = attn.astype(wout_ref.dtype)
        out = jnp.dot(attn, wout_ref[...], preferred_element_type=jnp.float32)
        out = out + bout_ref[0].astype(jnp.float32)
        o_ref[0] = out.astype(o_ref.dtype)                  # lane-dense (TQ, D) store


# ---------------------------------------------------------------------------
# Wrapper helpers
# ---------------------------------------------------------------------------
def _vmem_limit_bytes():
    """Per-generation scoped-VMEM budget derived from the chip's capacity."""
    try:
        cap = int(pltpu.get_tpu_info().vmem_capacity_bytes)
    except Exception:
        cap = 64 * _MIB                      # conservative: v7x per-TC VMEM
    if cap >= 128 * _MIB:                    # v5e / v6e: plenty of headroom
        return 100 * _MIB
    return max(cap - 24 * _MIB, 32 * _MIB)   # v7x: ~40 MiB scoped


def _tile_options(L, targets):
    opts = [t for t in targets if t <= L and L % t == 0]
    return opts if opts else [L]


def _invariant_spec(block_shape, index_map, single_buffer):
    if single_buffer:
        # Grid-invariant operand (constant index_map): one VMEM buffer is
        # enough; double-buffering it is pure VMEM waste.
        return pl.BlockSpec(block_shape, index_map, pipeline_mode=pl.Buffered(1))
    return pl.BlockSpec(block_shape, index_map)


# ---------------------------------------------------------------------------
# Public wrapper
# ---------------------------------------------------------------------------
def multi_head_self_attention(x, w_qkv, b_qkv, w_out, b_out, num_heads, *,
                              q_tile=None, kv_tile=None,
                              compute_dtype=jnp.bfloat16):
    """x: (B, L, D); w_qkv: (D, 3D); b_qkv: (3D,); w_out: (D, D); b_out: (D,).

    Weights are stored transposed vs. nn.Linear (in_features, out_features).
    """
    B, L, D = x.shape
    assert D % num_heads == 0, "embed_dim must be divisible by num_heads"
    hd = D // num_heads
    scale = float(hd) ** -0.5
    cdt = jnp.dtype(compute_dtype)

    # One-time parameter prep: fold the softmax scale into the Q projection,
    # split W_qkv per projection, cast weights to the (bf16) compute dtype for
    # the MXU; biases stay f32 and are added to the f32 accumulators.
    w_q = (w_qkv[:, :D] * scale).astype(cdt)
    w_k = w_qkv[:, D:2 * D].astype(cdt)
    w_v = w_qkv[:, 2 * D:].astype(cdt)
    b_q = (b_qkv[:D] * scale).astype(jnp.float32).reshape(1, D)
    b_k = b_qkv[D:2 * D].astype(jnp.float32).reshape(1, D)
    b_v = b_qkv[2 * D:].astype(jnp.float32).reshape(1, D)
    w_o = w_out.astype(cdt)
    b_o = b_out.astype(jnp.float32).reshape(1, D)

    x_isz = jnp.dtype(x.dtype).itemsize
    c_isz = cdt.itemsize
    vmem_limit = _vmem_limit_bytes()
    budget = int(0.6 * vmem_limit)
    lane = 128
    hd_pad = -(-hd // lane) * lane           # VMEM lane padding of per-head scratch

    def attn_footprint(tq_, tk_):
        blocks = (2 * tq_ * D * x_isz        # x tile (double buffered)
                  + 2 * 2 * tk_ * D * c_isz  # k, v tiles (double buffered)
                  + 2 * tq_ * D * x_isz      # output tile
                  + 2 * D * D * c_isz        # W_q + W_out (single buffered)
                  + 4 * D * 4)               # biases
        scratch = (num_heads * tq_ * hd_pad * (c_isz + 4)   # q_scr + acc_scr
                   + 2 * num_heads * tq_ * lane * 4)        # m, l (lane padded)
        return blocks + scratch

    # Grow q tiles toward 512 (K/V HBM re-reads scale with L/tq) and kv tiles
    # toward 256 (MXU-native width on v6e/v7x) while the working set fits.
    tq_opts = ([q_tile] if q_tile is not None
               else _tile_options(L, (512, 256, 128, 64, 32, 16, 8)))
    tk_opts = ([kv_tile] if kv_tile is not None
               else _tile_options(L, (256, 128, 64, 32, 16, 8)))
    tq, tk = tq_opts[-1], tk_opts[-1]
    found = False
    for cq in tq_opts:
        for ck in tk_opts:
            if attn_footprint(cq, ck) <= budget:
                tq, tk, found = cq, ck, True
                break
        if found:
            break
    # Megacore / v7x 2-TC: keep at least 2 parallel (batch x q-tile) work units.
    if q_tile is None and B * (L // tq) < 2:
        smaller = [t for t in tq_opts if t < tq]
        if smaller:
            tq = smaller[0]
    ts = tq                                   # kernel-1 sequence tile
    assert L % tq == 0 and L % tk == 0 and L % ts == 0
    # TODO(synk): for very large D (>= ~2048) the full (D, D) weight blocks no
    # longer fit the v7x budget; add a grid axis tiling the weight columns.

    kv_shape = jax.ShapeDtypeStruct((B, L, D), cdt)

    def _forward(single_buffer_weights):
        # ---- Kernel 1: K/V projection ----
        proj_cost = pl.CostEstimate(
            flops=int(4 * B * L * D * D),
            transcendentals=0,
            bytes_accessed=int(B * L * D * x_isz + 2 * D * D * c_isz
                               + 2 * B * L * D * c_isz))
        k_arr, v_arr = pl.pallas_call(
            _kv_proj_kernel,
            out_shape=(kv_shape, kv_shape),
            grid_spec=pltpu.PrefetchScalarGridSpec(
                num_scalar_prefetch=0,
                grid=(B, L // ts),
                in_specs=[
                    pl.BlockSpec((1, ts, D), lambda b, s: (b, s, 0)),
                    _invariant_spec((D, D), lambda b, s: (0, 0), single_buffer_weights),
                    _invariant_spec((1, D), lambda b, s: (0, 0), single_buffer_weights),
                    _invariant_spec((D, D), lambda b, s: (0, 0), single_buffer_weights),
                    _invariant_spec((1, D), lambda b, s: (0, 0), single_buffer_weights),
                ],
                out_specs=[pl.BlockSpec((1, ts, D), lambda b, s: (b, s, 0)),
                           pl.BlockSpec((1, ts, D), lambda b, s: (b, s, 0))],
            ),
            compiler_params=pltpu.CompilerParams(
                dimension_semantics=("parallel", "parallel"),
                vmem_limit_bytes=vmem_limit),
            cost_estimate=proj_cost,
        )(x, w_k, b_k, w_v, b_v)

        # ---- Kernel 2: Q projection + flash attention + output projection ----
        attn_cost = pl.CostEstimate(
            flops=int(4 * B * L * D * D + 4 * B * L * L * D),
            transcendentals=int(B * num_heads * L * L),
            bytes_accessed=int(B * L * D * x_isz                      # x (q rows)
                               + 2 * B * L * D * c_isz * (L // tq)    # k/v re-reads
                               + 2 * D * D * c_isz                    # weights
                               + B * L * D * x_isz))                  # output
        return pl.pallas_call(
            functools.partial(_flash_attn_kernel,
                              num_heads=num_heads, head_dim=hd),
            out_shape=jax.ShapeDtypeStruct((B, L, D), x.dtype),
            grid_spec=pltpu.PrefetchScalarGridSpec(
                num_scalar_prefetch=0,
                grid=(B, L // tq, L // tk),
                in_specs=[
                    pl.BlockSpec((1, tq, D), lambda b, qi, ki: (b, qi, 0)),   # x rows
                    _invariant_spec((D, D), lambda b, qi, ki: (0, 0), single_buffer_weights),
                    _invariant_spec((1, D), lambda b, qi, ki: (0, 0), single_buffer_weights),
                    pl.BlockSpec((1, tk, D), lambda b, qi, ki: (b, ki, 0)),   # k
                    pl.BlockSpec((1, tk, D), lambda b, qi, ki: (b, ki, 0)),   # v
                    _invariant_spec((D, D), lambda b, qi, ki: (0, 0), single_buffer_weights),
                    _invariant_spec((1, D), lambda b, qi, ki: (0, 0), single_buffer_weights),
                ],
                out_specs=pl.BlockSpec((1, tq, D), lambda b, qi, ki: (b, qi, 0)),
                scratch_shapes=[
                    pltpu.VMEM((num_heads, tq, hd), cdt),          # per-head Q
                    pltpu.VMEM((num_heads, tq, 1), jnp.float32),   # running max m
                    pltpu.VMEM((num_heads, tq, 1), jnp.float32),   # running sum l
                    pltpu.VMEM((num_heads, tq, hd), jnp.float32),  # output accumulator
                ],
            ),
            compiler_params=pltpu.CompilerParams(
                dimension_semantics=("parallel", "parallel", "arbitrary"),
                vmem_limit_bytes=vmem_limit),
            cost_estimate=attn_cost,
        )(x, w_q, b_q, k_arr, v_arr, w_o, b_o)

    try:
        return _forward(single_buffer_weights=True)
    except Exception:
        # Fallback for JAX builds without BlockSpec(pipeline_mode=...):
        # default double-buffering of the grid-invariant weight blocks.
        return _forward(single_buffer_weights=False)


# ---------------------------------------------------------------------------
# Pure-JAX reference mirroring the PyTorch forward exactly
# ---------------------------------------------------------------------------
def reference_mhsa(x, w_qkv, b_qkv, w_out, b_out, num_heads):
    B, L, D = x.shape
    head_dim = D // num_heads
    scale = float(head_dim) ** -0.5
    qkv = x @ w_qkv + b_qkv                                # (B, L, 3D)
    qkv = qkv.reshape(B, L, 3, num_heads, head_dim).transpose(2, 0, 3, 1, 4)
    q, k, v = qkv[0], qkv[1], qkv[2]                       # (B, H, L, hd)
    scores = jnp.einsum("bhqd,bhkd->bhqk", q, k) * scale
    probs = jax.nn.softmax(scores, axis=-1)
    out = jnp.einsum("bhqk,bhkd->bhqd", probs, v)          # (B, H, L, hd)
    out = out.transpose(0, 2, 1, 3).reshape(B, L, D)
    return out @ w_out + b_out


if __name__ == "__main__":
    def run_case(B, L, D, H, *, q_tile=None, kv_tile=None,
                 compute_dtype=jnp.bfloat16, atol=2e-2, rtol=2e-2):
        key = jax.random.PRNGKey(0)
        kx, k1, k2, k3, k4 = jax.random.split(key, 5)
        x = jax.random.normal(kx, (B, L, D), dtype=jnp.float32)
        # Synthetic params, stored transposed vs nn.Linear: (in, out).
        w_qkv = jax.random.normal(k1, (D, 3 * D), dtype=jnp.float32) * 0.05
        b_qkv = jax.random.normal(k2, (3 * D,), dtype=jnp.float32) * 0.05
        w_out = jax.random.normal(k3, (D, D), dtype=jnp.float32) * 0.05
        b_out = jax.random.normal(k4, (D,), dtype=jnp.float32) * 0.05

        out = multi_head_self_attention(
            x, w_qkv, b_qkv, w_out, b_out, H,
            q_tile=q_tile, kv_tile=kv_tile, compute_dtype=compute_dtype)
        out = jax.block_until_ready(out)
        ref = reference_mhsa(x, w_qkv, b_qkv, w_out, b_out, H)
        assert out.shape == (B, L, D)
        assert jnp.allclose(out, ref, atol=atol, rtol=rtol), (
            f"mismatch vs reference (B={B}, L={L}, D={D}, H={H})")

    # Toy config matching the module (f32 parity check, tight tolerance).
    run_case(B=2, L=8, D=32, H=4,
             compute_dtype=jnp.float32, atol=2e-3, rtol=2e-3)
    # Multi-tile path: online-softmax accumulation across 4 KV tiles and
    # 2 Q tiles per batch element, still f32 for a tight numeric check.
    run_case(B=2, L=256, D=128, H=2, q_tile=128, kv_tile=64,
             compute_dtype=jnp.float32, atol=2e-3, rtol=2e-3)
    # Default bf16 compute path (MXU/EUP-native dtype) with automatic tile
    # selection; wider tolerance absorbs bf16 rounding.
    run_case(B=2, L=256, D=128, H=2, atol=2e-2, rtol=2e-2)

    print("KERNEL_OK")
</pallas_src>

<mosaic_0001>
module attributes {stable_mosaic.version = 11 : i64} {
  func.func @_kv_proj_kernel(%arg0: i32, %arg1: i32, %arg2: memref<1x8x32xf32, #tpu.memory_space<vmem>>, %arg3: memref<32x32xf32, #tpu.memory_space<vmem>>, %arg4: memref<1x32xf32, #tpu.memory_space<vmem>>, %arg5: memref<32x32xf32, #tpu.memory_space<vmem>>, %arg6: memref<1x32xf32, #tpu.memory_space<vmem>>, %arg7: memref<1x8x32xf32, #tpu.memory_space<vmem>>, %arg8: memref<1x8x32xf32, #tpu.memory_space<vmem>>) attributes {dimension_semantics = [#tpu.dimension_semantics<parallel>, #tpu.dimension_semantics<parallel>], iteration_bounds = array<i64: 2, 1>, scalar_prefetch = 0 : i64, scratch_operands = 0 : i64, tpu.core_type = #tpu.core_type<tc>, window_params = [{transform_indices = @transform_0, window_bounds = array<i64: 1, 8, 32>}, {pipeline_mode = #tpu.pipeline_mode<synchronous>, transform_indices = @transform_1, window_bounds = array<i64: 32, 32>}, {pipeline_mode = #tpu.pipeline_mode<synchronous>, transform_indices = @transform_2, window_bounds = array<i64: 1, 32>}, {pipeline_mode = #tpu.pipeline_mode<synchronous>, transform_indices = @transform_3, window_bounds = array<i64: 32, 32>}, {pipeline_mode = #tpu.pipeline_mode<synchronous>, transform_indices = @transform_4, window_bounds = array<i64: 1, 32>}, {transform_indices = @transform_5, window_bounds = array<i64: 1, 8, 32>}, {transform_indices = @transform_6, window_bounds = array<i64: 1, 8, 32>}]} {
    %c0 = arith.constant 0 : index
    %c0_0 = arith.constant 0 : index
    %c0_1 = arith.constant 0 : index
    %0 = vector.load %arg2[%c0, %c0_0, %c0_1] : memref<1x8x32xf32, #tpu.memory_space<vmem>>, vector<1x8x32xf32>
    %1 = vector.shape_cast %0 : vector<1x8x32xf32> to vector<8x32xf32>
    %c0_2 = arith.constant 0 : index
    %c0_3 = arith.constant 0 : index
    %2 = vector.load %arg3[%c0_2, %c0_3] : memref<32x32xf32, #tpu.memory_space<vmem>>, vector<32x32xf32>
    %cst = arith.constant dense<0.000000e+00> : vector<8x32xf32>
    %3 = tpu.matmul %1, %2, %cst {dimension_numbers = #tpu.dot_dimension_numbers<[1], [0], [0], [1], [0, 0, 1, 1], [], []>} : vector<8x32xf32>, vector<32x32xf32>, vector<8x32xf32> -> vector<8x32xf32>
    %c0_4 = arith.constant 0 : index
    %c0_5 = arith.constant 0 : index
    %4 = vector.load %arg5[%c0_4, %c0_5] : memref<32x32xf32, #tpu.memory_space<vmem>>, vector<32x32xf32>
    %cst_6 = arith.constant dense<0.000000e+00> : vector<8x32xf32>
    %5 = tpu.matmul %1, %4, %cst_6 {dimension_numbers = #tpu.dot_dimension_numbers<[1], [0], [0], [1], [0, 0, 1, 1], [], []>} : vector<8x32xf32>, vector<32x32xf32>, vector<8x32xf32> -> vector<8x32xf32>
    %c0_7 = arith.constant 0 : index
    %c0_8 = arith.constant 0 : index
    %6 = vector.load %arg4[%c0_7, %c0_8] : memref<1x32xf32, #tpu.memory_space<vmem>>, vector<1x32xf32>
    %7 = vector.shape_cast %6 : vector<1x32xf32> to vector<32xf32>
    %8 = vector.shape_cast %7 : vector<32xf32> to vector<1x32xf32>
    %9 = vector.broadcast %8 : vector<1x32xf32> to vector<8x32xf32>
    %10 = arith.addf %3, %9 : vector<8x32xf32>
    %c0_9 = arith.constant 0 : index
    %c0_10 = arith.constant 0 : index
    %c0_11 = arith.constant 0 : index
    %11 = vector.load %arg7[%c0_9, %c0_10, %c0_11] : memref<1x8x32xf32, #tpu.memory_space<vmem>>, vector<1x8x32xf32>
    %12 = vector.shape_cast %11 : vector<1x8x32xf32> to vector<8x32xf32>
    %13 = vector.shape_cast %10 : vector<8x32xf32> to vector<1x8x32xf32>
    tpu.vector_store %arg7[%c0_9, %c0_10, %c0_11], %13 {strides = array<i32>} : memref<1x8x32xf32, #tpu.memory_space<vmem>>, vector<1x8x32xf32>,
    %c0_12 = arith.constant 0 : index
    %c0_13 = arith.constant 0 : index
    %14 = vector.load %arg6[%c0_12, %c0_13] : memref<1x32xf32, #tpu.memory_space<vmem>>, vector<1x32xf32>
    %15 = vector.shape_cast %14 : vector<1x32xf32> to vector<32xf32>
    %16 = vector.shape_cast %15 : vector<32xf32> to vector<1x32xf32>
    %17 = vector.broadcast %16 : vector<1x32xf32> to vector<8x32xf32>
    %18 = arith.addf %5, %17 : vector<8x32xf32>
    %c0_14 = arith.constant 0 : index
    %c0_15 = arith.constant 0 : index
    %c0_16 = arith.constant 0 : index
    %19 = vector.load %arg8[%c0_14, %c0_15, %c0_16] : memref<1x8x32xf32, #tpu.memory_space<vmem>>, vector<1x8x32xf32>
    %20 = vector.shape_cast %19 : vector<1x8x32xf32> to vector<8x32xf32>
    %21 = vector.shape_cast %18 : vector<8x32xf32> to vector<1x8x32xf32>
    tpu.vector_store %arg8[%c0_14, %c0_15, %c0_16], %21 {strides = array<i32>} : memref<1x8x32xf32, #tpu.memory_space<vmem>>, vector<1x8x32xf32>,
    return
  }
  func.func @transform_0(%arg0: i32, %arg1: i32) -> (i32, i32, i32) {
    %c0_i32 = arith.constant 0 : i32
    %c0_i32_0 = arith.constant 0 : i32
    return %arg0, %arg1, %c0_i32 : i32, i32, i32
  }
  func.func @transform_1(%arg0: i32, %arg1: i32) -> (i32, i32) {
    %c0_i32 = arith.constant 0 : i32
    %c0_i32_0 = arith.constant 0 : i32
    %c0_i32_1 = arith.constant 0 : i32
    return %c0_i32, %c0_i32_0 : i32, i32
  }
  func.func @transform_2(%arg0: i32, %arg1: i32) -> (i32, i32) {
    %c0_i32 = arith.constant 0 : i32
    %c0_i32_0 = arith.constant 0 : i32
    %c0_i32_1 = arith.constant 0 : i32
    return %c0_i32, %c0_i32_0 : i32, i32
  }
  func.func @transform_3(%arg0: i32, %arg1: i32) -> (i32, i32) {
    %c0_i32 = arith.constant 0 : i32
    %c0_i32_0 = arith.constant 0 : i32
    %c0_i32_1 = arith.constant 0 : i32
    return %c0_i32, %c0_i32_0 : i32, i32
  }
  func.func @transform_4(%arg0: i32, %arg1: i32) -> (i32, i32) {
    %c0_i32 = arith.constant 0 : i32
    %c0_i32_0 = arith.constant 0 : i32
    %c0_i32_1 = arith.constant 0 : i32
    return %c0_i32, %c0_i32_0 : i32, i32
  }
  func.func @transform_5(%arg0: i32, %arg1: i32) -> (i32, i32, i32) {
    %c0_i32 = arith.constant 0 : i32
    %c0_i32_0 = arith.constant 0 : i32
    return %arg0, %arg1, %c0_i32 : i32, i32, i32
  }
  func.func @transform_6(%arg0: i32, %arg1: i32) -> (i32, i32, i32) {
    %c0_i32 = arith.constant 0 : i32
    %c0_i32_0 = arith.constant 0 : i32
    return %arg0, %arg1, %c0_i32 : i32, i32, i32
  }
}

module attributes {stable_mosaic.version = 11 : i64} {
  func.func @_kv_proj_kernel(%arg0: i32, %arg1: i32, %arg2: memref<1x8x32xf32, #tpu.memory_space<vmem>>, %arg3: memref<32x32xf32, #tpu.memory_space<vmem>>, %arg4: memref<1x32xf32, #tpu.memory_space<vmem>>, %arg5: memref<32x32xf32, #tpu.memory_space<vmem>>, %arg6: memref<1x32xf32, #tpu.memory_space<vmem>>, %arg7: memref<1x8x32xf32, #tpu.memory_space<vmem>>, %arg8: memref<1x8x32xf32, #tpu.memory_space<vmem>>) attributes {dimension_semantics = [#tpu.dimension_semantics<parallel>, #tpu.dimension_semantics<parallel>], iteration_bounds = array<i64: 2, 1>, scalar_prefetch = 0 : i64, scratch_operands = 0 : i64, tpu.core_type = #tpu.core_type<tc>, window_params = [{transform_indices = @transform_0, window_bounds = array<i64: 1, 8, 32>}, {pipeline_mode = #tpu.pipeline_mode<synchronous>, transform_indices = @transform_1, window_bounds = array<i64: 32, 32>}, {pipeline_mode = #tpu.pipeline_mode<synchronous>, transform_indices = @transform_2, window_bounds = array<i64: 1, 32>}, {pipeline_mode = #tpu.pipeline_mode<synchronous>, transform_indices = @transform_3, window_bounds = array<i64: 32, 32>}, {pipeline_mode = #tpu.pipeline_mode<synchronous>, transform_indices = @transform_4, window_bounds = array<i64: 1, 32>}, {transform_indices = @transform_5, window_bounds = array<i64: 1, 8, 32>}, {transform_indices = @transform_6, window_bounds = array<i64: 1, 8, 32>}]} {
    %c0 = arith.constant 0 : index
    %c0_0 = arith.constant 0 : index
    %c0_1 = arith.constant 0 : index
    %0 = vector.load %arg2[%c0, %c0_0, %c0_1] : memref<1x8x32xf32, #tpu.memory_space<vmem>>, vector<1x8x32xf32>
    %1 = vector.shape_cast %0 : vector<1x8x32xf32> to vector<8x32xf32>
    %c0_2 = arith.constant 0 : index
    %c0_3 = arith.constant 0 : index
    %2 = vector.load %arg3[%c0_2, %c0_3] : memref<32x32xf32, #tpu.memory_space<vmem>>, vector<32x32xf32>
    %cst = arith.constant dense<0.000000e+00> : vector<8x32xf32>
    %3 = tpu.matmul %1, %2, %cst {dimension_numbers = #tpu.dot_dimension_numbers<[1], [0], [0], [1], [0, 0, 1, 1], [], []>} : vector<8x32xf32>, vector<32x32xf32>, vector<8x32xf32> -> vector<8x32xf32>
    %c0_4 = arith.constant 0 : index
    %c0_5 = arith.constant 0 : index
    %4 = vector.load %arg5[%c0_4, %c0_5] : memref<32x32xf32, #tpu.memory_space<vmem>>, vector<32x32xf32>
    %cst_6 = arith.constant dense<0.000000e+00> : vector<8x32xf32>
    %5 = tpu.matmul %1, %4, %cst_6 {dimension_numbers = #tpu.dot_dimension_numbers<[1], [0], [0], [1], [0, 0, 1, 1], [], []>} : vector<8x32xf32>, vector<32x32xf32>, vector<8x32xf32> -> vector<8x32xf32>
    %c0_7 = arith.constant 0 : index
    %c0_8 = arith.constant 0 : index
    %6 = vector.load %arg4[%c0_7, %c0_8] : memref<1x32xf32, #tpu.memory_space<vmem>>, vector<1x32xf32>
    %7 = vector.shape_cast %6 : vector<1x32xf32> to vector<32xf32>
    %8 = vector.shape_cast %7 : vector<32xf32> to vector<1x32xf32>
    %9 = vector.broadcast %8 : vector<1x32xf32> to vector<8x32xf32>
    %10 = arith.addf %3, %9 : vector<8x32xf32>
    %c0_9 = arith.constant 0 : index
    %c0_10 = arith.constant 0 : index
    %c0_11 = arith.constant 0 : index
    %11 = vector.load %arg7[%c0_9, %c0_10, %c0_11] : memref<1x8x32xf32, #tpu.memory_space<vmem>>, vector<1x8x32xf32>
    %12 = vector.shape_cast %11 : vector<1x8x32xf32> to vector<8x32xf32>
    %13 = vector.shape_cast %10 : vector<8x32xf32> to vector<1x8x32xf32>
    tpu.vector_store %arg7[%c0_9, %c0_10, %c0_11], %13 {strides = array<i32>} : memref<1x8x32xf32, #tpu.memory_space<vmem>>, vector<1x8x32xf32>,
    %c0_12 = arith.constant 0 : index
    %c0_13 = arith.constant 0 : index
    %14 = vector.load %arg6[%c0_12, %c0_13] : memref<1x32xf32, #tpu.memory_space<vmem>>, vector<1x32xf32>
    %15 = vector.shape_cast %14 : vector<1x32xf32> to vector<32xf32>
    %16 = vector.shape_cast %15 : vector<32xf32> to vector<1x32xf32>
    %17 = vector.broadcast %16 : vector<1x32xf32> to vector<8x32xf32>
    %18 = arith.addf %5, %17 : vector<8x32xf32>
    %c0_14 = arith.constant 0 : index
    %c0_15 = arith.constant 0 : index
    %c0_16 = arith.constant 0 : index
    %19 = vector.load %arg8[%c0_14, %c0_15, %c0_16] : memref<1x8x32xf32, #tpu.memory_space<vmem>>, vector<1x8x32xf32>
    %20 = vector.shape_cast %19 : vector<1x8x32xf32> to vector<8x32xf32>
    %21 = vector.shape_cast %18 : vector<8x32xf32> to vector<1x8x32xf32>
    tpu.vector_store %arg8[%c0_14, %c0_15, %c0_16], %21 {strides = array<i32>} : memref<1x8x32xf32, #tpu.memory_space<vmem>>, vector<1x8x32xf32>,
    return
  }
  func.func @transform_0(%arg0: i32, %arg1: i32) -> (i32, i32, i32) {
    %c0_i32 = arith.constant 0 : i32
    %c0_i32_0 = arith.constant 0 : i32
    return %arg0, %arg1, %c0_i32 : i32, i32, i32
  }
  func.func @transform_1(%arg0: i32, %arg1: i32) -> (i32, i32) {
    %c0_i32 = arith.constant 0 : i32
    %c0_i32_0 = arith.constant 0 : i32
    %c0_i32_1 = arith.constant 0 : i32
    return %c0_i32, %c0_i32_0 : i32, i32
  }
  func.func @transform_2(%arg0: i32, %arg1: i32) -> (i32, i32) {
    %c0_i32 = arith.constant 0 : i32
    %c0_i32_0 = arith.constant 0 : i32
    %c0_i32_1 = arith.constant 0 : i32
    return %c0_i32, %c0_i32_0 : i32, i32
  }
  func.func @transform_3(%arg0: i32, %arg1: i32) -> (i32, i32) {
    %c0_i32 = arith.constant 0 : i32
    %c0_i32_0 = arith.constant 0 : i32
    %c0_i32_1 = arith.constant 0 : i32
    return %c0_i32, %c0_i32_0 : i32, i32
  }
  func.func @transform_4(%arg0: i32, %arg1: i32) -> (i32, i32) {
    %c0_i32 = arith.constant 0 : i32
    %c0_i32_0 = arith.constant 0 : i32
    %c0_i32_1 = arith.constant 0 : i32
    return %c0_i32, %c0_i32_0 : i32, i32
  }
  func.func @transform_5(%arg0: i32, %arg1: i32) -> (i32, i32, i32) {
    %c0_i32 = arith.constant 0 : i32
    %c0_i32_0 = arith.constant 0 : i32
    return %arg0, %arg1, %c0_i32 : i32, i32, i32
  }
  func.func @transform_6(%arg0: i32, %arg1: i32) -> (i32, i32, i32) {
    %c0_i32 = arith.constant 0 : i32
    %c0_i32_0 = arith.constant 0 : i32
    return %arg0, %arg1, %c0_i32 : i32, i32, i32
  }
}

</mosaic_0001>

<llo_original>
// kernel: tpu_custom_call.1
$region0: #{tpu_custom_call.1}
  #allocation0 [shape = 'u32[]', space=smem, size = 0x4, offset = 0x4, fixed_abs, tag = 'smem constant byte address 0x4 - core index']
  #allocation1 [shape = 'u32[144,128]{1,0:T(1,128)}', space=vmem, size = 0x12000, scoped, tag = 'internal scratch']
  %s0 = inlined_call_operand.hbm [shape: f32[2,8,32], index: 0, kind: input, shape index: {}]
  %s1 = inlined_call_operand.hbm [shape: f32[32,32], index: 1, kind: input, shape index: {}]
  %s2 = inlined_call_operand.vmem [shape: f32[1,32], index: 2, kind: input, shape index: {}]
  %s3 = inlined_call_operand.hbm [shape: f32[32,32], index: 3, kind: input, shape index: {}]
  %s4 = inlined_call_operand.vmem [shape: f32[1,32], index: 4, kind: input, shape index: {}]
  %s5 = inlined_call_operand.hbm [shape: f32[2,8,32], index: 5, kind: output, shape index: {0}]
  %s6 = inlined_call_operand.hbm [shape: f32[2,8,32], index: 6, kind: output, shape index: {1}]
  %7 = xla_tuple %s5, %s6
  %s8 = sld [smem:[#allocation0]]
  $region73: #{tpu_custom_call.1} parent=0
    _
  %s10 = ssub.s32 1, %s8
  %s11 = scalar_select 0, %s10, %s8
  $region1: #{tpu_custom_call.1} parent=0
    #allocation2 [shape = 'u8[8192]{0}', space=vmem, size = 0x2000, scoped, tag = 'input window, operand 0']
    #allocation3 [shape = 's32[2]{0}', space=sflag, size = 0x8, scoped, tag = 'scoped memory for tpu_custom_call.1']
    #allocation4 [shape = 's32[2]{0}', space=sflag, size = 0x8, scoped, tag = 'scoped memory for tpu_custom_call.1']
    #allocation5 [shape = 'u8[16384]{0}', space=vmem, size = 0x4000, scoped, tag = 'input window, operand 1, single buffered']
    #allocation6 [shape = 's32[1]{0}', space=sflag, size = 0x4, scoped, tag = 'scoped memory for tpu_custom_call.1']
    #allocation7 [shape = 'u8[16384]{0}', space=vmem, size = 0x4000, scoped, tag = 'input window, operand 3, single buffered']
    #allocation8 [shape = 'u8[8192]{0}', space=vmem, size = 0x2000, scoped, tag = 'output window, operand 0']
    #allocation9 [shape = 'u8[8192]{0}', space=vmem, size = 0x2000, scoped, tag = 'output window, operand 1']
    #allocation10 [shape = 's32[2]{0}', space=sflag, size = 0x8, scoped, tag = 'scoped memory for tpu_custom_call.1']
    %12 = vsyncpa [#allocation3], 0
    %s13 = scalar_lea.sflag [#allocation3], 1
    %14 = vsyncpa %s13, 0
    %15 = vsyncpa [#allocation6], 0
    %16 = vsyncpa [#allocation4], 0
    %s17 = scalar_lea.sflag [#allocation4], 1
    %18 = vsyncpa %s17, 0
    %19 = vsyncpa [#allocation10], 0
    %s20 = scalar_lea.sflag [#allocation10], 1
    %21 = vsyncpa %s20, 0
    loop: start=0, step=1, limit=4
    $region2: #{tpu_custom_call.1} parent=1 // loop_pre_header
      _
    $region3: #{tpu_custom_call.1} parent=1 // loop_header
      %s23 = sphi 0, %s27
      %p24 = scmp.ge.s32.totalorder %s23, 4
      %s30 = sphi 0, %s42
      %s31 = sphi 0, %s38
      %s32 = sphi 0, %s30
      %s33 = sphi 0, %s31
      %s34 = sphi 0, %s32
      %s35 = sphi 0, %s33
      %s47 = sphi 0, %s49
      %s50 = sphi 0, %s47
      %s51 = sphi 0, %s50
      %s67 = sphi 0, %s51
      %s71 = sphi 0, %s71
      %s73 = sphi 0, %s71
      %s74 = sphi 0, %s73
      %s88 = sphi 0, %s74
      %s92 = sphi 0, %s92
      %s94 = sphi 0, %s92
      %s95 = sphi 0, %s94
      %s109 = sphi 0, %s95
      %s113 = sphi 0, %s113
      %s115 = sphi 0, %s113
      %s116 = sphi 0, %s115
      %s130 = sphi 0, %s116
      %s134 = sphi 0, %s134
      %s136 = sphi 0, %s134
      %s137 = sphi 0, %s136
      %s151 = sphi 0, %s137
      %s159 = sphi 0, %s161
      %s162 = sphi 0, %s159
      %s163 = sphi 0, %s162
      %s179 = sphi 0, %s163
      %s187 = sphi 0, %s189
      %s190 = sphi 0, %s187
      %s191 = sphi 0, %s190
      %s207 = sphi 0, %s191
    $region4: #{tpu_custom_call.1} parent=1 // loop_header_branch
      %26 = sbr.rel (%p24) target = $region8
    $region5: #{tpu_custom_call.1} parent=1 // loop_body
      %s28 = ssub.s32 %s23, 1
      %s29 = ssub.s32 %s23, 2
      %s36 = sadd.s32 1, %s31
      %p37 = scmp.ge.s32.totalorder %s36, 1
      %s38 = scalar_select %p37, 0, %s36
      %s39 = sadd.s32 1, %s30
      %s40 = scalar_select %p37, %s39, %s30
      %p41 = scmp.ge.s32.totalorder %s40, 2
      %s42 = scalar_select %p41, 0, %s40
      %s43 = ssub.s32 %s30, %s42
      %s44 = ssub.s32 %s31, %s38
      %s45 = sor.u32 %s43, %s44
      %p46 = scmp.eq.s32.totalorder %s45, 0
      %s48 = sadd.s32 %s47, 1
      %s49 = scalar_select %p46, %s47, %s48
      %p52 = pneg %p46
      %p53 = scmp.eq.s32.totalorder %s23, 1
      %p54 = por %p52, %p53
      %p55 = scmp.ne.s32.totalorder %s47, %s50
      %p56 = scmp.eq.s32.totalorder %s23, 0
      %p57 = por %p55, %p56
      %p58 = scmp.ne.s32.totalorder %s47, %s50
      %p59 = scmp.eq.s32.totalorder %s28, 1
      %p60 = por %p58, %p59
      %p61 = scmp.ne.s32.totalorder %s50, %s51
      %p62 = scmp.eq.s32.totalorder %s28, 0
      %p63 = por %p61, %p62
      %p64 = scmp.ne.s32.totalorder %s50, %s51
      %p65 = scmp.eq.s32.totalorder %s29, 1
      %p66 = por %p64, %p65
      %p68 = scmp.ne.s32.totalorder %s51, %s67
      %p69 = scmp.eq.s32.totalorder %s29, 0
      %p70 = por %p68, %p69
      %s72 = sadd.s32 %s71, 1
      %p75 = scmp.eq.s32.totalorder %s23, 1
      %p76 = scmp.ne.s32.totalorder %s71, %s73
      %p77 = scmp.eq.s32.totalorder %s23, 0
      %p78 = por %p76, %p77
      %p79 = scmp.ne.s32.totalorder %s71, %s73
      %p80 = scmp.eq.s32.totalorder %s28, 1
      %p81 = por %p79, %p80
      %p82 = scmp.ne.s32.totalorder %s73, %s74
      %p83 = scmp.eq.s32.totalorder %s28, 0
      %p84 = por %p82, %p83
      %p85 = scmp.ne.s32.totalorder %s73, %s74
      %p86 = scmp.eq.s32.totalorder %s29, 1
      %p87 = por %p85, %p86
      %p89 = scmp.ne.s32.totalorder %s74, %s88
      %p90 = scmp.eq.s32.totalorder %s29, 0
      %p91 = por %p89, %p90
      %s93 = sadd.s32 %s92, 1
      %p96 = scmp.eq.s32.totalorder %s23, 1
      %p97 = scmp.ne.s32.totalorder %s92, %s94
      %p98 = scmp.eq.s32.totalorder %s23, 0
      %p99 = por %p97, %p98
      %p100 = scmp.ne.s32.totalorder %s92, %s94
      %p101 = scmp.eq.s32.totalorder %s28, 1
      %p102 = por %p100, %p101
      %p103 = scmp.ne.s32.totalorder %s94, %s95
      %p104 = scmp.eq.s32.totalorder %s28, 0
      %p105 = por %p103, %p104
      %p106 = scmp.ne.s32.totalorder %s94, %s95
      %p107 = scmp.eq.s32.totalorder %s29, 1
      %p108 = por %p106, %p107
      %p110 = scmp.ne.s32.totalorder %s95, %s109
      %p111 = scmp.eq.s32.totalorder %s29, 0
      %p112 = por %p110, %p111
      %s114 = sadd.s32 %s113, 1
      %p117 = scmp.eq.s32.totalorder %s23, 1
      %p118 = scmp.ne.s32.totalorder %s113, %s115
      %p119 = scmp.eq.s32.totalorder %s23, 0
      %p120 = por %p118, %p119
      %p121 = scmp.ne.s32.totalorder %s113, %s115
      %p122 = scmp.eq.s32.totalorder %s28, 1
      %p123 = por %p121, %p122
      %p124 = scmp.ne.s32.totalorder %s115, %s116
      %p125 = scmp.eq.s32.totalorder %s28, 0
      %p126 = por %p124, %p125
      %p127 = scmp.ne.s32.totalorder %s115, %s116
      %p128 = scmp.eq.s32.totalorder %s29, 1
      %p129 = por %p127, %p128
      %p131 = scmp.ne.s32.totalorder %s116, %s130
      %p132 = scmp.eq.s32.totalorder %s29, 0
      %p133 = por %p131, %p132
      %s135 = sadd.s32 %s134, 1
      %p138 = scmp.eq.s32.totalorder %s23, 1
      %p139 = scmp.ne.s32.totalorder %s134, %s136
      %p140 = scmp.eq.s32.totalorder %s23, 0
      %p141 = por %p139, %p140
      %p142 = scmp.ne.s32.totalorder %s134, %s136
      %p143 = scmp.eq.s32.totalorder %s28, 1
      %p144 = por %p142, %p143
      %p145 = scmp.ne.s32.totalorder %s136, %s137
      %p146 = scmp.eq.s32.totalorder %s28, 0
      %p147 = por %p145, %p146
      %p148 = scmp.ne.s32.totalorder %s136, %s137
      %p149 = scmp.eq.s32.totalorder %s29, 1
      %p150 = por %p148, %p149
      %p152 = scmp.ne.s32.totalorder %s137, %s151
      %p153 = scmp.eq.s32.totalorder %s29, 0
      %p154 = por %p152, %p153
      %s155 = ssub.s32 %s30, %s42
      %s156 = ssub.s32 %s31, %s38
      %s157 = sor.u32 %s155, %s156
      %p158 = scmp.eq.s32.totalorder %s157, 0
      %s160 = sadd.s32 %s159, 1
      %s161 = scalar_select %p158, %s159, %s160
      %p164 = pneg %p158
      %p165 = scmp.eq.s32.totalorder %s23, 1
      %p166 = por %p164, %p165
      %p167 = scmp.ne.s32.totalorder %s159, %s162
      %p168 = scmp.eq.s32.totalorder %s23, 0
      %p169 = por %p167, %p168
      %p170 = scmp.ne.s32.totalorder %s159, %s162
      %p171 = scmp.eq.s32.totalorder %s28, 1
      %p172 = por %p170, %p171
      %p173 = scmp.ne.s32.totalorder %s162, %s163
      %p174 = scmp.eq.s32.totalorder %s28, 0
      %p175 = por %p173, %p174
      %p176 = scmp.ne.s32.totalorder %s162, %s163
      %p177 = scmp.eq.s32.totalorder %s29, 1
      %p178 = por %p176, %p177
      %p180 = scmp.ne.s32.totalorder %s163, %s179
      %p181 = scmp.eq.s32.totalorder %s29, 0
      %p182 = por %p180, %p181
      %s183 = ssub.s32 %s30, %s42
      %s184 = ssub.s32 %s31, %s38
      %s185 = sor.u32 %s183, %s184
      %p186 = scmp.eq.s32.totalorder %s185, 0
      %s188 = sadd.s32 %s187, 1
      %s189 = scalar_select %p186, %s187, %s188
      %p192 = pneg %p186
      %p193 = scmp.eq.s32.totalorder %s23, 1
      %p194 = por %p192, %p193
      %p195 = scmp.ne.s32.totalorder %s187, %s190
      %p196 = scmp.eq.s32.totalorder %s23, 0
      %p197 = por %p195, %p196
      %p198 = scmp.ne.s32.totalorder %s187, %s190
      %p199 = scmp.eq.s32.totalorder %s28, 1
      %p200 = por %p198, %p199
      %p201 = scmp.ne.s32.totalorder %s190, %s191
      %p202 = scmp.eq.s32.totalorder %s28, 0
      %p203 = por %p201, %p202
      %p204 = scmp.ne.s32.totalorder %s190, %s191
      %p205 = scmp.eq.s32.totalorder %s29, 1
      %p206 = por %p204, %p205
      %p208 = scmp.ne.s32.totalorder %s191, %s207
      %p209 = scmp.eq.s32.totalorder %s29, 0
      %p210 = por %p208, %p209
      %p211 = scmp.le.s32.totalorder 1, %s23
      %p212 = scmp.lt.s32.totalorder %s23, 3
      %p213 = pnand %p211, %p212
      %p214 = pneg %p213
      // Predicated region
      $region9: #{tpu_custom_call.1} parent=5 // pred_check
        _
      $region10: #{tpu_custom_call.1} parent=5 // pred_check_branch
        %216 = sbr.rel (%p213) target = $region12
      $region11: #{tpu_custom_call.1} parent=5 // pred_region
        %s217 = ssub.s32 %s23, 1
        // Predicated region
        $region13: #{tpu_custom_call.1} parent=11 // pred_check
          %p218 = pneg %p84
        $region14: #{tpu_custom_call.1} parent=11 // pred_check_branch
          %220 = sbr.rel (%p218) target = $region16
        $region15: #{tpu_custom_call.1} parent=11 // pred_region
          %s222 = ssub.s32 512, 512
          %223 = vsyncadd [#allocation6], %s222
          %s224 = sshll.u32 [#allocation5], 4
          %s225 = int_to_ptr.vmem [resolvable:$true] %s224
          %230 = dma.hbm_to_vmem [thread:$0]  %s1, 512, %s225, [#allocation6], 128, 128, 8
        $region16: #{tpu_custom_call.1} parent=11 // pred_fallthru
          _
        // Predicated region
        $region17: #{tpu_custom_call.1} parent=11 // pred_check
          %p231 = pneg %p105
        $region18: #{tpu_custom_call.1} parent=11 // pred_check_branch
          %233 = sbr.rel (%p231) target = $region20
        $region19: #{tpu_custom_call.1} parent=11 // pred_region
          _
        $region20: #{tpu_custom_call.1} parent=11 // pred_fallthru
          _
        // Predicated region
        $region21: #{tpu_custom_call.1} parent=11 // pred_check
          %p234 = pneg %p126
        $region22: #{tpu_custom_call.1} parent=11 // pred_check_branch
          %236 = sbr.rel (%p234) target = $region24
        $region23: #{tpu_custom_call.1} parent=11 // pred_region
          %s238 = ssub.s32 512, 512
          %239 = vsyncadd [#allocation6], %s238
          %s240 = sshll.u32 [#allocation7], 4
          %s241 = int_to_ptr.vmem [resolvable:$true] %s240
          %246 = dma.hbm_to_vmem [thread:$0]  %s3, 512, %s241, [#allocation6], 128, 128, 8
        $region24: #{tpu_custom_call.1} parent=11 // pred_fallthru
          _
        // Predicated region
        $region25: #{tpu_custom_call.1} parent=11 // pred_check
          %p247 = pneg %p147
        $region26: #{tpu_custom_call.1} parent=11 // pred_check_branch
          %249 = sbr.rel (%p247) target = $region28
        $region27: #{tpu_custom_call.1} parent=11 // pred_region
          _
        $region28: #{tpu_custom_call.1} parent=11 // pred_fallthru
          _
      $region12: #{tpu_custom_call.1} parent=5 // pred_fallthru
        _
      %p250 = scmp.lt.s32.totalorder %s23, 2
      // Predicated region
      $region29: #{tpu_custom_call.1} parent=5 // pred_check
        %p251 = pneg %p250
      $region30: #{tpu_custom_call.1} parent=5 // pred_check_branch
        %253 = sbr.rel (%p251) target = $region32
      $region31: #{tpu_custom_call.1} parent=5 // pred_region
        // Predicated region
        $region33: #{tpu_custom_call.1} parent=31 // pred_check
          %p254 = pneg %p57
        $region34: #{tpu_custom_call.1} parent=31 // pred_check_branch
          %256 = sbr.rel (%p254) target = $region36
        $region35: #{tpu_custom_call.1} parent=31 // pred_region
          %s257 = sand.u32 %s47, 1
          %s258 = scalar_lea.sflag [#allocation3], %s257
          %s259 = sand.u32 %s47, 1
          %s260 = smul.addr %s259, 8
          %s261 = scalar_lea.vmem [#allocation2], %s260
          %s263 = ssub.s32 128, 128
          %264 = vsyncadd %s258, %s263
          %s265 = sadd.s32 %s31, %s30
          %s266 = smul.addr %s265, 128
          %s267 = scalar_lea.hbm %s0, %s266
          %s269 = sshll.u32 %s261, 4
          %s270 = int_to_ptr.vmem [resolvable:$true] %s269
          %272 = dma.hbm_to_vmem [thread:$0]  %s267, 128, %s270, %s258
        $region36: #{tpu_custom_call.1} parent=31 // pred_fallthru
          _
      $region32: #{tpu_custom_call.1} parent=5 // pred_fallthru
        _
      %p273 = scmp.le.s32.totalorder 1, %s23
      %p274 = scmp.lt.s32.totalorder %s23, 3
      %p275 = pnand %p273, %p274
      %p276 = pneg %p275
      // Predicated region
      $region37: #{tpu_custom_call.1} parent=5 // pred_check
        _
      $region38: #{tpu_custom_call.1} parent=5 // pred_check_branch
        %278 = sbr.rel (%p275) target = $region40
      $region39: #{tpu_custom_call.1} parent=5 // pred_region
        %s279 = ssub.s32 %s23, 1
        %s280 = sand.u32 %s50, 1
        %s281 = scalar_lea.sflag [#allocation3], %s280
        %s282 = sand.u32 %s50, 1
        %s283 = smul.addr %s282, 8
        %s284 = scalar_lea.vmem [#allocation2], %s283
        // Predicated region
        $region41: #{tpu_custom_call.1} parent=39 // pred_check
          %p285 = pneg %p63
        $region42: #{tpu_custom_call.1} parent=39 // pred_check_branch
          %287 = sbr.rel (%p285) target = $region44
        $region43: #{tpu_custom_call.1} parent=39 // pred_region
          %288 = dma.done %s281, 128
        $region44: #{tpu_custom_call.1} parent=39 // pred_fallthru
          _
        // Predicated region
        $region45: #{tpu_custom_call.1} parent=39 // pred_check
          %p289 = pneg %p84
        $region46: #{tpu_custom_call.1} parent=39 // pred_check_branch
          %291 = sbr.rel (%p289) target = $region48
        $region47: #{tpu_custom_call.1} parent=39 // pred_region
          %292 = dma.done [#allocation6], 512
        $region48: #{tpu_custom_call.1} parent=39 // pred_fallthru
          _
        // Predicated region
        $region49: #{tpu_custom_call.1} parent=39 // pred_check
          %p293 = pneg %p126
        $region50: #{tpu_custom_call.1} parent=39 // pred_check_branch
          %295 = sbr.rel (%p293) target = $region52
        $region51: #{tpu_custom_call.1} parent=39 // pred_region
          %296 = dma.done [#allocation6], 512
        $region52: #{tpu_custom_call.1} parent=39 // pred_fallthru
          _
        %s297 = sand.u32 %s50, 1
        %s298 = scalar_lea.sflag [#allocation3], %s297
        %s299 = sand.u32 %s50, 1
        %s300 = smul.addr %s299, 8
        %s301 = scalar_lea.vmem [#allocation2], %s300
        %p302 = pneg %p63
        %p303 = pneg %p60
        %p304 = pneg %p84
        %p305 = pneg %p81
        %p306 = pneg %p105
        %p307 = pneg %p102
        %p308 = pneg %p126
        %p309 = pneg %p123
        %p310 = pneg %p147
        %p311 = pneg %p144
        %p312 = pneg %p175
        %p313 = pneg %p172
        %s314 = sand.u32 %s162, 1
        %s315 = scalar_lea.sflag [#allocation4], %s314
        %s316 = sand.u32 %s162, 1
        %s317 = smul.addr %s316, 8
        %s318 = scalar_lea.vmem [#allocation8], %s317
        %p319 = pneg %p203
        %p320 = pneg %p200
        %s321 = sand.u32 %s190, 1
        %s322 = scalar_lea.sflag [#allocation10], %s321
        %s323 = sand.u32 %s190, 1
        %s324 = smul.addr %s323, 8
        %s325 = scalar_lea.vmem [#allocation9], %s324
        %v326 = vld [vmem:[%s284] sm:$0xff]
        %v327 = vld [vmem:[#allocation5] sm:$0xff]
        %v328 = vld [vmem:[#allocation5 + $0x8] sm:$0xff]
        %v329 = vld [vmem:[#allocation5 + $0x10] sm:$0xff]
        %v330 = vld [vmem:[#allocation5 + $0x18] sm:$0xff]
        %v331 = vld [vmem:[#allocation7] sm:$0xff]
        %v332 = vld [vmem:[#allocation7 + $0x8] sm:$0xff]
        %v333 = vld [vmem:[#allocation7 + $0x10] sm:$0xff]
        %v334 = vld [vmem:[#allocation7 + $0x18] sm:$0xff]
        %v335 = vld [vmem:[%s2] sm:$0x1]
        %v337 = vlaneseq
        %v338 = vshrl.u32 %v337, 7
        %v339 = vsub.s32 0, %v338
        %v340 = vrot.slane %v335, %v339
        %vm342 = vcmask 261120
        %v344 = vsel %vm342, %v326, 0
        %346 = vmatprep.subr.mxu0 0.0
        %347 = vmatpush1.msra.mxu0 %v327
        %348 = vmatprep.subr.mxu0 0.0
        %349 = vmatpush1.msra.mxu0 %v328
        %350 = vmatprep.subr.mxu0 0.0
        %351 = vmatpush1.msra.mxu0 %v329
        %352 = vmatprep.subr.mxu0 0.0
        %353 = vmatpush1.msra.mxu0 %v330
        %354 = vmatprep.subr.mxu0 0.0
        %355 = vmatpush1.msra.mxu0 0.0
        %356 = vmatprep.subr.mxu0 0.0
        %357 = vmatpush1.msra.mxu0 0.0
        %358 = vmatprep.subr.mxu0 0.0
        %359 = vmatpush1.msra.mxu0 0.0
        %360 = vmatprep.subr.mxu0 0.0
        %361 = vmatpush1.msra.mxu0 0.0
        %362 = vmatprep.subr.mxu0 0.0
        %363 = vmatpush1.msra.mxu0 0.0
        %364 = vmatprep.subr.mxu0 0.0
        %365 = vmatpush1.msra.mxu0 0.0
        %366 = vmatprep.subr.mxu0 0.0
        %367 = vmatpush1.msra.mxu0 0.0
        %368 = vmatprep.subr.mxu0 0.0
        %369 = vmatpush1.msra.mxu0 0.0
        %370 = vmatprep.subr.mxu0 0.0
        %371 = vmatpush1.msra.mxu0 0.0
        %372 = vmatprep.subr.mxu0 0.0
        %373 = vmatpush1.msra.mxu0 0.0
        %374 = vmatprep.subr.mxu0 0.0
        %375 = vmatpush1.msra.mxu0 0.0
        %376 = vmatprep.subr.mxu0 0.0
        %377 = vmatpush1.msra.mxu0 0.0
        %378 = vmatprep.subr.mxu0 0.0
        %379 = vmatpush1.msra.mxu0 0.0
        %380 = vmatprep.subr.mxu0 0.0
        %381 = vmatpush1.msra.mxu0 0.0
        %382 = vmatprep.subr.mxu0 0.0
        %383 = vmatpush1.msra.mxu0 0.0
        %384 = vmatprep.subr.mxu0 0.0
        %385 = vmatpush1.msra.mxu0 0.0
        %386 = vmatprep.subr.mxu0 0.0
        %387 = vmatpush1.msra.mxu0 0.0
        %388 = vmatprep.subr.mxu0 0.0
        %389 = vmatpush1.msra.mxu0 0.0
        %390 = vmatprep.subr.mxu0 0.0
        %391 = vmatpush1.msra.mxu0 0.0
        %392 = vmatprep.subr.mxu0 0.0
        %393 = vmatpush1.msra.mxu0 0.0
        %394 = vmatprep.subr.mxu0 0.0
        %395 = vmatpush1.msra.mxu0 0.0
        %396 = vmatprep.subr.mxu0 0.0
        %397 = vmatpush1.msra.mxu0 0.0
        %398 = vmatprep.subr.mxu0 0.0
        %399 = vmatpush1.msra.mxu0 0.0
        %400 = vmatprep.subr.mxu0 0.0
        %401 = vmatpush1.msra.mxu0 0.0
        %402 = vmatprep.subr.mxu0 0.0
        %403 = vmatpush1.msra.mxu0 0.0
        %404 = vmatprep.subr.mxu0 0.0
        %405 = vmatpush1.msra.mxu0 0.0
        %406 = vmatprep.subr.mxu0 0.0
        %407 = vmatpush1.msra.mxu0 0.0
        %408 = vmatprep.subr.mxu0 0.0
        %409 = vmatpush1.msra.mxu0 0.0
        %410 = vmatprep.mubr.f32.mxu0 0.0
        %411 = vmatmul.mubr.f32.gmra.mrb[0].mxu0 %v344
        %v412 = vpop.f32.mrb[0].mxu0
        %v413 = vadd.f32 %v340, %v412
        %v414 = vpop.f32.mrb[0].mxu0
        %415 = vdwg.mxu0
        %416 = vst.msk [vmem:[%s318] sm:$0xff] %vm342, %v413
        %v417 = vld [vmem:[%s4] sm:$0x1]
        %v419 = vlaneseq
        %v420 = vshrl.u32 %v419, 7
        %v421 = vsub.s32 0, %v420
        %v422 = vrot.slane %v417, %v421
        %424 = vmatprep.subr.mxu0 0.0
        %425 = vmatpush1.msra.mxu0 %v331
        %426 = vmatprep.subr.mxu0 0.0
        %427 = vmatpush1.msra.mxu0 %v332
        %428 = vmatprep.subr.mxu0 0.0
        %429 = vmatpush1.msra.mxu0 %v333
        %430 = vmatprep.subr.mxu0 0.0
        %431 = vmatpush1.msra.mxu0 %v334
        %432 = vmatprep.subr.mxu0 0.0
        %433 = vmatpush1.msra.mxu0 0.0
        %434 = vmatprep.subr.mxu0 0.0
        %435 = vmatpush1.msra.mxu0 0.0
        %436 = vmatprep.subr.mxu0 0.0
        %437 = vmatpush1.msra.mxu0 0.0
        %438 = vmatprep.subr.mxu0 0.0
        %439 = vmatpush1.msra.mxu0 0.0
        %440 = vmatprep.subr.mxu0 0.0
        %441 = vmatpush1.msra.mxu0 0.0
        %442 = vmatprep.subr.mxu0 0.0
        %443 = vmatpush1.msra.mxu0 0.0
        %444 = vmatprep.subr.mxu0 0.0
        %445 = vmatpush1.msra.mxu0 0.0
        %446 = vmatprep.subr.mxu0 0.0
        %447 = vmatpush1.msra.mxu0 0.0
        %448 = vmatprep.subr.mxu0 0.0
        %449 = vmatpush1.msra.mxu0 0.0
        %450 = vmatprep.subr.mxu0 0.0
        %451 = vmatpush1.msra.mxu0 0.0
        %452 = vmatprep.subr.mxu0 0.0
        %453 = vmatpush1.msra.mxu0 0.0
        %454 = vmatprep.subr.mxu0 0.0
        %455 = vmatpush1.msra.mxu0 0.0
        %456 = vmatprep.subr.mxu0 0.0
        %457 = vmatpush1.msra.mxu0 0.0
        %458 = vmatprep.subr.mxu0 0.0
        %459 = vmatpush1.msra.mxu0 0.0
        %460 = vmatprep.subr.mxu0 0.0
        %461 = vmatpush1.msra.mxu0 0.0
        %462 = vmatprep.subr.mxu0 0.0
        %463 = vmatpush1.msra.mxu0 0.0
        %464 = vmatprep.subr.mxu0 0.0
        %465 = vmatpush1.msra.mxu0 0.0
        %466 = vmatprep.subr.mxu0 0.0
        %467 = vmatpush1.msra.mxu0 0.0
        %468 = vmatprep.subr.mxu0 0.0
        %469 = vmatpush1.msra.mxu0 0.0
        %470 = vmatprep.subr.mxu0 0.0
        %471 = vmatpush1.msra.mxu0 0.0
        %472 = vmatprep.subr.mxu0 0.0
        %473 = vmatpush1.msra.mxu0 0.0
        %474 = vmatprep.subr.mxu0 0.0
        %475 = vmatpush1.msra.mxu0 0.0
        %476 = vmatprep.subr.mxu0 0.0
        %477 = vmatpush1.msra.mxu0 0.0
        %478 = vmatprep.subr.mxu0 0.0
        %479 = vmatpush1.msra.mxu0 0.0
        %480 = vmatprep.subr.mxu0 0.0
        %481 = vmatpush1.msra.mxu0 0.0
        %482 = vmatprep.subr.mxu0 0.0
        %483 = vmatpush1.msra.mxu0 0.0
        %484 = vmatprep.subr.mxu0 0.0
        %485 = vmatpush1.msra.mxu0 0.0
        %486 = vmatprep.subr.mxu0 0.0
        %487 = vmatpush1.msra.mxu0 0.0
        %488 = vmatprep.mubr.f32.mxu0 0.0
        %489 = vmatmul.mubr.f32.gmra.mrb[0].mxu0 %v344
        %v490 = vpop.f32.mrb[0].mxu0
        %v491 = vadd.f32 %v422, %v490
        %v492 = vpop.f32.mrb[0].mxu0
        %493 = vdwg.mxu0
        %494 = vst.msk [vmem:[%s325] sm:$0xff] %vm342, %v491
        %s495 = sand.u32 %s162, 1
        %s496 = scalar_lea.sflag [#allocation4], %s495
        %s497 = sand.u32 %s162, 1
        %s498 = smul.addr %s497, 8
        %s499 = scalar_lea.vmem [#allocation8], %s498
        %s500 = sand.u32 %s190, 1
        %s501 = scalar_lea.sflag [#allocation10], %s500
        %s502 = sand.u32 %s190, 1
        %s503 = smul.addr %s502, 8
        %s504 = scalar_lea.vmem [#allocation9], %s503
        // Predicated region
        $region53: #{tpu_custom_call.1} parent=39 // pred_check
          %p505 = pneg %p172
        $region54: #{tpu_custom_call.1} parent=39 // pred_check_branch
          %507 = sbr.rel (%p505) target = $region56
        $region55: #{tpu_custom_call.1} parent=39 // pred_region
          %s509 = ssub.s32 128, 128
          %510 = vsyncadd %s496, %s509
          %s511 = sadd.s32 %s33, %s32
          %s512 = smul.addr %s511, 128
          %s513 = scalar_lea.hbm %s5, %s512
          %s515 = sshll.u32 %s499, 4
          %s516 = int_to_ptr.vmem [resolvable:$true] %s515
          %518 = dma.vmem_to_hbm [thread:$0]  %s516, 128, %s513, %s496
        $region56: #{tpu_custom_call.1} parent=39 // pred_fallthru
          _
        // Predicated region
        $region57: #{tpu_custom_call.1} parent=39 // pred_check
          %p519 = pneg %p200
        $region58: #{tpu_custom_call.1} parent=39 // pred_check_branch
          %521 = sbr.rel (%p519) target = $region60
        $region59: #{tpu_custom_call.1} parent=39 // pred_region
          %s523 = ssub.s32 128, 128
          %524 = vsyncadd %s501, %s523
          %s525 = sadd.s32 %s33, %s32
          %s526 = smul.addr %s525, 128
          %s527 = scalar_lea.hbm %s6, %s526
          %s529 = sshll.u32 %s504, 4
          %s530 = int_to_ptr.vmem [resolvable:$true] %s529
          %532 = dma.vmem_to_hbm [thread:$0]  %s530, 128, %s527, %s501
        $region60: #{tpu_custom_call.1} parent=39 // pred_fallthru
          _
      $region40: #{tpu_custom_call.1} parent=5 // pred_fallthru
        _
      %p533 = scmp.le.s32.totalorder 2, %s23
      // Predicated region
      $region61: #{tpu_custom_call.1} parent=5 // pred_check
        %p534 = pneg %p533
      $region62: #{tpu_custom_call.1} parent=5 // pred_check_branch
        %536 = sbr.rel (%p534) target = $region64
      $region63: #{tpu_custom_call.1} parent=5 // pred_region
        %s537 = ssub.s32 %s23, 2
        // Predicated region
        $region65: #{tpu_custom_call.1} parent=63 // pred_check
          %p538 = pneg %p178
        $region66: #{tpu_custom_call.1} parent=63 // pred_check_branch
          %540 = sbr.rel (%p538) target = $region68
        $region67: #{tpu_custom_call.1} parent=63 // pred_region
          %s541 = sand.u32 %s163, 1
          %s542 = scalar_lea.sflag [#allocation4], %s541
          %s543 = sand.u32 %s163, 1
          %s544 = smul.addr %s543, 8
          %s545 = scalar_lea.vmem [#allocation8], %s544
          %546 = dma.done %s542, 128
        $region68: #{tpu_custom_call.1} parent=63 // pred_fallthru
          _
        // Predicated region
        $region69: #{tpu_custom_call.1} parent=63 // pred_check
          %p547 = pneg %p206
        $region70: #{tpu_custom_call.1} parent=63 // pred_check_branch
          %549 = sbr.rel (%p547) target = $region72
        $region71: #{tpu_custom_call.1} parent=63 // pred_region
          %s550 = sand.u32 %s191, 1
          %s551 = scalar_lea.sflag [#allocation10], %s550
          %s552 = sand.u32 %s191, 1
          %s553 = smul.addr %s552, 8
          %s554 = scalar_lea.vmem [#allocation9], %s553
          %555 = dma.done %s551, 128
        $region72: #{tpu_custom_call.1} parent=63 // pred_fallthru
          _
      $region64: #{tpu_custom_call.1} parent=5 // pred_fallthru
        _
    $region6: #{tpu_custom_call.1} parent=1 // loop_footer
      %s27 = sadd.s32 1, %s23
    $region7: #{tpu_custom_call.1} parent=1 // loop_footer_branch
      %22 = sbr.rel target = $region3
    $region8: #{tpu_custom_call.1} parent=1 // loop_exit
      _
    %556 = vsyncpa [#allocation3], 1
    %s557 = scalar_lea.sflag [#allocation3], 1
    %558 = vsyncpa %s557, 1
    %559 = vsyncpa [#allocation6], 1
    %560 = vsyncpa [#allocation4], 1
    %s561 = scalar_lea.sflag [#allocation4], 1
    %562 = vsyncpa %s561, 1
    %563 = vsyncpa [#allocation10], 1
    %s564 = scalar_lea.sflag [#allocation10], 1
    %565 = vsyncpa %s564, 1

// kernel: tpu_custom_call.1
$region0: #{tpu_custom_call.1}
  #allocation0 [shape = 'u32[]', space=smem, size = 0x4, offset = 0x4, fixed_abs, tag = 'smem constant byte address 0x4 - core index']
  #allocation1 [shape = 'u32[144,128]{1,0:T(1,128)}', space=vmem, size = 0x12000, scoped, tag = 'internal scratch']
  %s0 = inlined_call_operand.hbm [shape: f32[2,8,32], index: 0, kind: input, shape index: {}]
  %s1 = inlined_call_operand.hbm [shape: f32[32,32], index: 1, kind: input, shape index: {}]
  %s2 = inlined_call_operand.vmem [shape: f32[1,32], index: 2, kind: input, shape index: {}]
  %s3 = inlined_call_operand.hbm [shape: f32[32,32], index: 3, kind: input, shape index: {}]
  %s4 = inlined_call_operand.vmem [shape: f32[1,32], index: 4, kind: input, shape index: {}]
  %s5 = inlined_call_operand.hbm [shape: f32[2,8,32], index: 5, kind: output, shape index: {0}]
  %s6 = inlined_call_operand.hbm [shape: f32[2,8,32], index: 6, kind: output, shape index: {1}]
  %7 = xla_tuple %s5, %s6
  %s8 = sld [smem:[#allocation0]]
  $region73: #{tpu_custom_call.1} parent=0
    _
  %s10 = ssub.s32 1, %s8
  %s11 = scalar_select 0, %s10, %s8
  $region1: #{tpu_custom_call.1} parent=0
    #allocation2 [shape = 'u8[8192]{0}', space=vmem, size = 0x2000, scoped, tag = 'input window, operand 0']
    #allocation3 [shape = 's32[2]{0}', space=sflag, size = 0x8, scoped, tag = 'scoped memory for tpu_custom_call.1']
    #allocation4 [shape = 's32[2]{0}', space=sflag, size = 0x8, scoped, tag = 'scoped memory for tpu_custom_call.1']
    #allocation5 [shape = 'u8[16384]{0}', space=vmem, size = 0x4000, scoped, tag = 'input window, operand 1, single buffered']
    #allocation6 [shape = 's32[1]{0}', space=sflag, size = 0x4, scoped, tag = 'scoped memory for tpu_custom_call.1']
    #allocation7 [shape = 'u8[16384]{0}', space=vmem, size = 0x4000, scoped, tag = 'input window, operand 3, single buffered']
    #allocation8 [shape = 'u8[8192]{0}', space=vmem, size = 0x2000, scoped, tag = 'output window, operand 0']
    #allocation9 [shape = 'u8[8192]{0}', space=vmem, size = 0x2000, scoped, tag = 'output window, operand 1']
    #allocation10 [shape = 's32[2]{0}', space=sflag, size = 0x8, scoped, tag = 'scoped memory for tpu_custom_call.1']
    %12 = vsyncpa [#allocation3], 0
    %s13 = scalar_lea.sflag [#allocation3], 1
    %14 = vsyncpa %s13, 0
    %15 = vsyncpa [#allocation6], 0
    %16 = vsyncpa [#allocation4], 0
    %s17 = scalar_lea.sflag [#allocation4], 1
    %18 = vsyncpa %s17, 0
    %19 = vsyncpa [#allocation10], 0
    %s20 = scalar_lea.sflag [#allocation10], 1
    %21 = vsyncpa %s20, 0
    loop: start=0, step=1, limit=4
    $region2: #{tpu_custom_call.1} parent=1 // loop_pre_header
      _
    $region3: #{tpu_custom_call.1} parent=1 // loop_header
      %s23 = sphi 0, %s27
      %p24 = scmp.ge.s32.totalorder %s23, 4
      %s30 = sphi 0, %s42
      %s31 = sphi 0, %s38
      %s32 = sphi 0, %s30
      %s33 = sphi 0, %s31
      %s34 = sphi 0, %s32
      %s35 = sphi 0, %s33
      %s47 = sphi 0, %s49
      %s50 = sphi 0, %s47
      %s51 = sphi 0, %s50
      %s67 = sphi 0, %s51
      %s71 = sphi 0, %s71
      %s73 = sphi 0, %s71
      %s74 = sphi 0, %s73
      %s88 = sphi 0, %s74
      %s92 = sphi 0, %s92
      %s94 = sphi 0, %s92
      %s95 = sphi 0, %s94
      %s109 = sphi 0, %s95
      %s113 = sphi 0, %s113
      %s115 = sphi 0, %s113
      %s116 = sphi 0, %s115
      %s130 = sphi 0, %s116
      %s134 = sphi 0, %s134
      %s136 = sphi 0, %s134
      %s137 = sphi 0, %s136
      %s151 = sphi 0, %s137
      %s159 = sphi 0, %s161
      %s162 = sphi 0, %s159
      %s163 = sphi 0, %s162
      %s179 = sphi 0, %s163
      %s187 = sphi 0, %s189
      %s190 = sphi 0, %s187
      %s191 = sphi 0, %s190
      %s207 = sphi 0, %s191
    $region4: #{tpu_custom_call.1} parent=1 // loop_header_branch
      %26 = sbr.rel (%p24) target = $region8
    $region5: #{tpu_custom_call.1} parent=1 // loop_body
      %s28 = ssub.s32 %s23, 1
      %s29 = ssub.s32 %s23, 2
      %s36 = sadd.s32 1, %s31
      %p37 = scmp.ge.s32.totalorder %s36, 1
      %s38 = scalar_select %p37, 0, %s36
      %s39 = sadd.s32 1, %s30
      %s40 = scalar_select %p37, %s39, %s30
      %p41 = scmp.ge.s32.totalorder %s40, 2
      %s42 = scalar_select %p41, 0, %s40
      %s43 = ssub.s32 %s30, %s42
      %s44 = ssub.s32 %s31, %s38
      %s45 = sor.u32 %s43, %s44
      %p46 = scmp.eq.s32.totalorder %s45, 0
      %s48 = sadd.s32 %s47, 1
      %s49 = scalar_select %p46, %s47, %s48
      %p52 = pneg %p46
      %p53 = scmp.eq.s32.totalorder %s23, 1
      %p54 = por %p52, %p53
      %p55 = scmp.ne.s32.totalorder %s47, %s50
      %p56 = scmp.eq.s32.totalorder %s23, 0
      %p57 = por %p55, %p56
      %p58 = scmp.ne.s32.totalorder %s47, %s50
      %p59 = scmp.eq.s32.totalorder %s28, 1
      %p60 = por %p58, %p59
      %p61 = scmp.ne.s32.totalorder %s50, %s51
      %p62 = scmp.eq.s32.totalorder %s28, 0
      %p63 = por %p61, %p62
      %p64 = scmp.ne.s32.totalorder %s50, %s51
      %p65 = scmp.eq.s32.totalorder %s29, 1
      %p66 = por %p64, %p65
      %p68 = scmp.ne.s32.totalorder %s51, %s67
      %p69 = scmp.eq.s32.totalorder %s29, 0
      %p70 = por %p68, %p69
      %s72 = sadd.s32 %s71, 1
      %p75 = scmp.eq.s32.totalorder %s23, 1
      %p76 = scmp.ne.s32.totalorder %s71, %s73
      %p77 = scmp.eq.s32.totalorder %s23, 0
      %p78 = por %p76, %p77
      %p79 = scmp.ne.s32.totalorder %s71, %s73
      %p80 = scmp.eq.s32.totalorder %s28, 1
      %p81 = por %p79, %p80
      %p82 = scmp.ne.s32.totalorder %s73, %s74
      %p83 = scmp.eq.s32.totalorder %s28, 0
      %p84 = por %p82, %p83
      %p85 = scmp.ne.s32.totalorder %s73, %s74
      %p86 = scmp.eq.s32.totalorder %s29, 1
      %p87 = por %p85, %p86
      %p89 = scmp.ne.s32.totalorder %s74, %s88
      %p90 = scmp.eq.s32.totalorder %s29, 0
      %p91 = por %p89, %p90
      %s93 = sadd.s32 %s92, 1
      %p96 = scmp.eq.s32.totalorder %s23, 1
      %p97 = scmp.ne.s32.totalorder %s92, %s94
      %p98 = scmp.eq.s32.totalorder %s23, 0
      %p99 = por %p97, %p98
      %p100 = scmp.ne.s32.totalorder %s92, %s94
      %p101 = scmp.eq.s32.totalorder %s28, 1
      %p102 = por %p100, %p101
      %p103 = scmp.ne.s32.totalorder %s94, %s95
      %p104 = scmp.eq.s32.totalorder %s28, 0
      %p105 = por %p103, %p104
      %p106 = scmp.ne.s32.totalorder %s94, %s95
      %p107 = scmp.eq.s32.totalorder %s29, 1
      %p108 = por %p106, %p107
      %p110 = scmp.ne.s32.totalorder %s95, %s109
      %p111 = scmp.eq.s32.totalorder %s29, 0
      %p112 = por %p110, %p111
      %s114 = sadd.s32 %s113, 1
      %p117 = scmp.eq.s32.totalorder %s23, 1
      %p118 = scmp.ne.s32.totalorder %s113, %s115
      %p119 = scmp.eq.s32.totalorder %s23, 0
      %p120 = por %p118, %p119
      %p121 = scmp.ne.s32.totalorder %s113, %s115
      %p122 = scmp.eq.s32.totalorder %s28, 1
      %p123 = por %p121, %p122
      %p124 = scmp.ne.s32.totalorder %s115, %s116
      %p125 = scmp.eq.s32.totalorder %s28, 0
      %p126 = por %p124, %p125
      %p127 = scmp.ne.s32.totalorder %s115, %s116
      %p128 = scmp.eq.s32.totalorder %s29, 1
      %p129 = por %p127, %p128
      %p131 = scmp.ne.s32.totalorder %s116, %s130
      %p132 = scmp.eq.s32.totalorder %s29, 0
      %p133 = por %p131, %p132
      %s135 = sadd.s32 %s134, 1
      %p138 = scmp.eq.s32.totalorder %s23, 1
      %p139 = scmp.ne.s32.totalorder %s134, %s136
      %p140 = scmp.eq.s32.totalorder %s23, 0
      %p141 = por %p139, %p140
      %p142 = scmp.ne.s32.totalorder %s134, %s136
      %p143 = scmp.eq.s32.totalorder %s28, 1
      %p144 = por %p142, %p143
      %p145 = scmp.ne.s32.totalorder %s136, %s137
      %p146 = scmp.eq.s32.totalorder %s28, 0
      %p147 = por %p145, %p146
      %p148 = scmp.ne.s32.totalorder %s136, %s137
      %p149 = scmp.eq.s32.totalorder %s29, 1
      %p150 = por %p148, %p149
      %p152 = scmp.ne.s32.totalorder %s137, %s151
      %p153 = scmp.eq.s32.totalorder %s29, 0
      %p154 = por %p152, %p153
      %s155 = ssub.s32 %s30, %s42
      %s156 = ssub.s32 %s31, %s38
      %s157 = sor.u32 %s155, %s156
      %p158 = scmp.eq.s32.totalorder %s157, 0
      %s160 = sadd.s32 %s159, 1
      %s161 = scalar_select %p158, %s159, %s160
      %p164 = pneg %p158
      %p165 = scmp.eq.s32.totalorder %s23, 1
      %p166 = por %p164, %p165
      %p167 = scmp.ne.s32.totalorder %s159, %s162
      %p168 = scmp.eq.s32.totalorder %s23, 0
      %p169 = por %p167, %p168
      %p170 = scmp.ne.s32.totalorder %s159, %s162
      %p171 = scmp.eq.s32.totalorder %s28, 1
      %p172 = por %p170, %p171
      %p173 = scmp.ne.s32.totalorder %s162, %s163
      %p174 = scmp.eq.s32.totalorder %s28, 0
      %p175 = por %p173, %p174
      %p176 = scmp.ne.s32.totalorder %s162, %s163
      %p177 = scmp.eq.s32.totalorder %s29, 1
      %p178 = por %p176, %p177
      %p180 = scmp.ne.s32.totalorder %s163, %s179
      %p181 = scmp.eq.s32.totalorder %s29, 0
      %p182 = por %p180, %p181
      %s183 = ssub.s32 %s30, %s42
      %s184 = ssub.s32 %s31, %s38
      %s185 = sor.u32 %s183, %s184
      %p186 = scmp.eq.s32.totalorder %s185, 0
      %s188 = sadd.s32 %s187, 1
      %s189 = scalar_select %p186, %s187, %s188
      %p192 = pneg %p186
      %p193 = scmp.eq.s32.totalorder %s23, 1
      %p194 = por %p192, %p193
      %p195 = scmp.ne.s32.totalorder %s187, %s190
      %p196 = scmp.eq.s32.totalorder %s23, 0
      %p197 = por %p195, %p196
      %p198 = scmp.ne.s32.totalorder %s187, %s190
      %p199 = scmp.eq.s32.totalorder %s28, 1
      %p200 = por %p198, %p199
      %p201 = scmp.ne.s32.totalorder %s190, %s191
      %p202 = scmp.eq.s32.totalorder %s28, 0
      %p203 = por %p201, %p202
      %p204 = scmp.ne.s32.totalorder %s190, %s191
      %p205 = scmp.eq.s32.totalorder %s29, 1
      %p206 = por %p204, %p205
      %p208 = scmp.ne.s32.totalorder %s191, %s207
      %p209 = scmp.eq.s32.totalorder %s29, 0
      %p210 = por %p208, %p209
      %p211 = scmp.le.s32.totalorder 1, %s23
      %p212 = scmp.lt.s32.totalorder %s23, 3
      %p213 = pnand %p211, %p212
      %p214 = pneg %p213
      // Predicated region
      $region9: #{tpu_custom_call.1} parent=5 // pred_check
        _
      $region10: #{tpu_custom_call.1} parent=5 // pred_check_branch
        %216 = sbr.rel (%p213) target = $region12
      $region11: #{tpu_custom_call.1} parent=5 // pred_region
        %s217 = ssub.s32 %s23, 1
        // Predicated region
        $region13: #{tpu_custom_call.1} parent=11 // pred_check
          %p218 = pneg %p84
        $region14: #{tpu_custom_call.1} parent=11 // pred_check_branch
          %220 = sbr.rel (%p218) target = $region16
        $region15: #{tpu_custom_call.1} parent=11 // pred_region
          %s222 = ssub.s32 512, 512
          %223 = vsyncadd [#allocation6], %s222
          %s224 = sshll.u32 [#allocation5], 4
          %s225 = int_to_ptr.vmem [resolvable:$true] %s224
          %230 = dma.hbm_to_vmem [thread:$0]  %s1, 512, %s225, [#allocation6], 128, 128, 8
        $region16: #{tpu_custom_call.1} parent=11 // pred_fallthru
          _
        // Predicated region
        $region17: #{tpu_custom_call.1} parent=11 // pred_check
          %p231 = pneg %p105
        $region18: #{tpu_custom_call.1} parent=11 // pred_check_branch
          %233 = sbr.rel (%p231) target = $region20
        $region19: #{tpu_custom_call.1} parent=11 // pred_region
          _
        $region20: #{tpu_custom_call.1} parent=11 // pred_fallthru
          _
        // Predicated region
        $region21: #{tpu_custom_call.1} parent=11 // pred_check
          %p234 = pneg %p126
        $region22: #{tpu_custom_call.1} parent=11 // pred_check_branch
          %236 = sbr.rel (%p234) target = $region24
        $region23: #{tpu_custom_call.1} parent=11 // pred_region
          %s238 = ssub.s32 512, 512
          %239 = vsyncadd [#allocation6], %s238
          %s240 = sshll.u32 [#allocation7], 4
          %s241 = int_to_ptr.vmem [resolvable:$true] %s240
          %246 = dma.hbm_to_vmem [thread:$0]  %s3, 512, %s241, [#allocation6], 128, 128, 8
        $region24: #{tpu_custom_call.1} parent=11 // pred_fallthru
          _
        // Predicated region
        $region25: #{tpu_custom_call.1} parent=11 // pred_check
          %p247 = pneg %p147
        $region26: #{tpu_custom_call.1} parent=11 // pred_check_branch
          %249 = sbr.rel (%p247) target = $region28
        $region27: #{tpu_custom_call.1} parent=11 // pred_region
          _
        $region28: #{tpu_custom_call.1} parent=11 // pred_fallthru
          _
      $region12: #{tpu_custom_call.1} parent=5 // pred_fallthru
        _
      %p250 = scmp.lt.s32.totalorder %s23, 2
      // Predicated region
      $region29: #{tpu_custom_call.1} parent=5 // pred_check
        %p251 = pneg %p250
      $region30: #{tpu_custom_call.1} parent=5 // pred_check_branch
        %253 = sbr.rel (%p251) target = $region32
      $region31: #{tpu_custom_call.1} parent=5 // pred_region
        // Predicated region
        $region33: #{tpu_custom_call.1} parent=31 // pred_check
          %p254 = pneg %p57
        $region34: #{tpu_custom_call.1} parent=31 // pred_check_branch
          %256 = sbr.rel (%p254) target = $region36
        $region35: #{tpu_custom_call.1} parent=31 // pred_region
          %s257 = sand.u32 %s47, 1
          %s258 = scalar_lea.sflag [#allocation3], %s257
          %s259 = sand.u32 %s47, 1
          %s260 = smul.addr %s259, 8
          %s261 = scalar_lea.vmem [#allocation2], %s260
          %s263 = ssub.s32 128, 128
          %264 = vsyncadd %s258, %s263
          %s265 = sadd.s32 %s31, %s30
          %s266 = smul.addr %s265, 128
          %s267 = scalar_lea.hbm %s0, %s266
          %s269 = sshll.u32 %s261, 4
          %s270 = int_to_ptr.vmem [resolvable:$true] %s269
          %272 = dma.hbm_to_vmem [thread:$0]  %s267, 128, %s270, %s258
        $region36: #{tpu_custom_call.1} parent=31 // pred_fallthru
          _
      $region32: #{tpu_custom_call.1} parent=5 // pred_fallthru
        _
      %p273 = scmp.le.s32.totalorder 1, %s23
      %p274 = scmp.lt.s32.totalorder %s23, 3
      %p275 = pnand %p273, %p274
      %p276 = pneg %p275
      // Predicated region
      $region37: #{tpu_custom_call.1} parent=5 // pred_check
        _
      $region38: #{tpu_custom_call.1} parent=5 // pred_check_branch
        %278 = sbr.rel (%p275) target = $region40
      $region39: #{tpu_custom_call.1} parent=5 // pred_region
        %s279 = ssub.s32 %s23, 1
        %s280 = sand.u32 %s50, 1
        %s281 = scalar_lea.sflag [#allocation3], %s280
        %s282 = sand.u32 %s50, 1
        %s283 = smul.addr %s282, 8
        %s284 = scalar_lea.vmem [#allocation2], %s283
        // Predicated region
        $region41: #{tpu_custom_call.1} parent=39 // pred_check
          %p285 = pneg %p63
        $region42: #{tpu_custom_call.1} parent=39 // pred_check_branch
          %287 = sbr.rel (%p285) target = $region44
        $region43: #{tpu_custom_call.1} parent=39 // pred_region
          %288 = dma.done %s281, 128
        $region44: #{tpu_custom_call.1} parent=39 // pred_fallthru
          _
        // Predicated region
        $region45: #{tpu_custom_call.1} parent=39 // pred_check
          %p289 = pneg %p84
        $region46: #{tpu_custom_call.1} parent=39 // pred_check_branch
          %291 = sbr.rel (%p289) target = $region48
        $region47: #{tpu_custom_call.1} parent=39 // pred_region
          %292 = dma.done [#allocation6], 512
        $region48: #{tpu_custom_call.1} parent=39 // pred_fallthru
          _
        // Predicated region
        $region49: #{tpu_custom_call.1} parent=39 // pred_check
          %p293 = pneg %p126
        $region50: #{tpu_custom_call.1} parent=39 // pred_check_branch
          %295 = sbr.rel (%p293) target = $region52
        $region51: #{tpu_custom_call.1} parent=39 // pred_region
          %296 = dma.done [#allocation6], 512
        $region52: #{tpu_custom_call.1} parent=39 // pred_fallthru
          _
        %s297 = sand.u32 %s50, 1
        %s298 = scalar_lea.sflag [#allocation3], %s297
        %s299 = sand.u32 %s50, 1
        %s300 = smul.addr %s299, 8
        %s301 = scalar_lea.vmem [#allocation2], %s300
        %p302 = pneg %p63
        %p303 = pneg %p60
        %p304 = pneg %p84
        %p305 = pneg %p81
        %p306 = pneg %p105
        %p307 = pneg %p102
        %p308 = pneg %p126
        %p309 = pneg %p123
        %p310 = pneg %p147
        %p311 = pneg %p144
        %p312 = pneg %p175
        %p313 = pneg %p172
        %s314 = sand.u32 %s162, 1
        %s315 = scalar_lea.sflag [#allocation4], %s314
        %s316 = sand.u32 %s162, 1
        %s317 = smul.addr %s316, 8
        %s318 = scalar_lea.vmem [#allocation8], %s317
        %p319 = pneg %p203
        %p320 = pneg %p200
        %s321 = sand.u32 %s190, 1
        %s322 = scalar_lea.sflag [#allocation10], %s321
        %s323 = sand.u32 %s190, 1
        %s324 = smul.addr %s323, 8
        %s325 = scalar_lea.vmem [#allocation9], %s324
        %v326 = vld [vmem:[%s284] sm:$0xff]
        %v327 = vld [vmem:[#allocation5] sm:$0xff]
        %v328 = vld [vmem:[#allocation5 + $0x8] sm:$0xff]
        %v329 = vld [vmem:[#allocation5 + $0x10] sm:$0xff]
        %v330 = vld [vmem:[#allocation5 + $0x18] sm:$0xff]
        %v331 = vld [vmem:[#allocation7] sm:$0xff]
        %v332 = vld [vmem:[#allocation7 + $0x8] sm:$0xff]
        %v333 = vld [vmem:[#allocation7 + $0x10] sm:$0xff]
        %v334 = vld [vmem:[#allocation7 + $0x18] sm:$0xff]
        %v335 = vld [vmem:[%s2] sm:$0x1]
        %v337 = vlaneseq
        %v338 = vshrl.u32 %v337, 7
        %v339 = vsub.s32 0, %v338
        %v340 = vrot.slane %v335, %v339
        %vm342 = vcmask 261120
        %v344 = vsel %vm342, %v326, 0
        %346 = vmatprep.subr.mxu0 0.0
        %347 = vmatpush1.msra.mxu0 %v327
        %348 = vmatprep.subr.mxu0 0.0
        %349 = vmatpush1.msra.mxu0 %v328
        %350 = vmatprep.subr.mxu0 0.0
        %351 = vmatpush1.msra.mxu0 %v329
        %352 = vmatprep.subr.mxu0 0.0
        %353 = vmatpush1.msra.mxu0 %v330
        %354 = vmatprep.subr.mxu0 0.0
        %355 = vmatpush1.msra.mxu0 0.0
        %356 = vmatprep.subr.mxu0 0.0
        %357 = vmatpush1.msra.mxu0 0.0
        %358 = vmatprep.subr.mxu0 0.0
        %359 = vmatpush1.msra.mxu0 0.0
        %360 = vmatprep.subr.mxu0 0.0
        %361 = vmatpush1.msra.mxu0 0.0
        %362 = vmatprep.subr.mxu0 0.0
        %363 = vmatpush1.msra.mxu0 0.0
        %364 = vmatprep.subr.mxu0 0.0
        %365 = vmatpush1.msra.mxu0 0.0
        %366 = vmatprep.subr.mxu0 0.0
        %367 = vmatpush1.msra.mxu0 0.0
        %368 = vmatprep.subr.mxu0 0.0
        %369 = vmatpush1.msra.mxu0 0.0
        %370 = vmatprep.subr.mxu0 0.0
        %371 = vmatpush1.msra.mxu0 0.0
        %372 = vmatprep.subr.mxu0 0.0
        %373 = vmatpush1.msra.mxu0 0.0
        %374 = vmatprep.subr.mxu0 0.0
        %375 = vmatpush1.msra.mxu0 0.0
        %376 = vmatprep.subr.mxu0 0.0
        %377 = vmatpush1.msra.mxu0 0.0
        %378 = vmatprep.subr.mxu0 0.0
        %379 = vmatpush1.msra.mxu0 0.0
        %380 = vmatprep.subr.mxu0 0.0
        %381 = vmatpush1.msra.mxu0 0.0
        %382 = vmatprep.subr.mxu0 0.0
        %383 = vmatpush1.msra.mxu0 0.0
        %384 = vmatprep.subr.mxu0 0.0
        %385 = vmatpush1.msra.mxu0 0.0
        %386 = vmatprep.subr.mxu0 0.0
        %387 = vmatpush1.msra.mxu0 0.0
        %388 = vmatprep.subr.mxu0 0.0
        %389 = vmatpush1.msra.mxu0 0.0
        %390 = vmatprep.subr.mxu0 0.0
        %391 = vmatpush1.msra.mxu0 0.0
        %392 = vmatprep.subr.mxu0 0.0
        %393 = vmatpush1.msra.mxu0 0.0
        %394 = vmatprep.subr.mxu0 0.0
        %395 = vmatpush1.msra.mxu0 0.0
        %396 = vmatprep.subr.mxu0 0.0
        %397 = vmatpush1.msra.mxu0 0.0
        %398 = vmatprep.subr.mxu0 0.0
        %399 = vmatpush1.msra.mxu0 0.0
        %400 = vmatprep.subr.mxu0 0.0
        %401 = vmatpush1.msra.mxu0 0.0
        %402 = vmatprep.subr.mxu0 0.0
        %403 = vmatpush1.msra.mxu0 0.0
        %404 = vmatprep.subr.mxu0 0.0
        %405 = vmatpush1.msra.mxu0 0.0
        %406 = vmatprep.subr.mxu0 0.0
        %407 = vmatpush1.msra.mxu0 0.0
        %408 = vmatprep.subr.mxu0 0.0
        %409 = vmatpush1.msra.mxu0 0.0
        %410 = vmatprep.mubr.f32.mxu0 0.0
        %411 = vmatmul.mubr.f32.gmra.mrb[0].mxu0 %v344
        %v412 = vpop.f32.mrb[0].mxu0
        %v413 = vadd.f32 %v340, %v412
        %v414 = vpop.f32.mrb[0].mxu0
        %415 = vdwg.mxu0
        %416 = vst.msk [vmem:[%s318] sm:$0xff] %vm342, %v413
        %v417 = vld [vmem:[%s4] sm:$0x1]
        %v419 = vlaneseq
        %v420 = vshrl.u32 %v419, 7
        %v421 = vsub.s32 0, %v420
        %v422 = vrot.slane %v417, %v421
        %424 = vmatprep.subr.mxu0 0.0
        %425 = vmatpush1.msra.mxu0 %v331
        %426 = vmatprep.subr.mxu0 0.0
        %427 = vmatpush1.msra.mxu0 %v332
        %428 = vmatprep.subr.mxu0 0.0
        %429 = vmatpush1.msra.mxu0 %v333
        %430 = vmatprep.subr.mxu0 0.0
        %431 = vmatpush1.msra.mxu0 %v334
        %432 = vmatprep.subr.mxu0 0.0
        %433 = vmatpush1.msra.mxu0 0.0
        %434 = vmatprep.subr.mxu0 0.0
        %435 = vmatpush1.msra.mxu0 0.0
        %436 = vmatprep.subr.mxu0 0.0
        %437 = vmatpush1.msra.mxu0 0.0
        %438 = vmatprep.subr.mxu0 0.0
        %439 = vmatpush1.msra.mxu0 0.0
        %440 = vmatprep.subr.mxu0 0.0
        %441 = vmatpush1.msra.mxu0 0.0
        %442 = vmatprep.subr.mxu0 0.0
        %443 = vmatpush1.msra.mxu0 0.0
        %444 = vmatprep.subr.mxu0 0.0
        %445 = vmatpush1.msra.mxu0 0.0
        %446 = vmatprep.subr.mxu0 0.0
        %447 = vmatpush1.msra.mxu0 0.0
        %448 = vmatprep.subr.mxu0 0.0
        %449 = vmatpush1.msra.mxu0 0.0
        %450 = vmatprep.subr.mxu0 0.0
        %451 = vmatpush1.msra.mxu0 0.0
        %452 = vmatprep.subr.mxu0 0.0
        %453 = vmatpush1.msra.mxu0 0.0
        %454 = vmatprep.subr.mxu0 0.0
        %455 = vmatpush1.msra.mxu0 0.0
        %456 = vmatprep.subr.mxu0 0.0
        %457 = vmatpush1.msra.mxu0 0.0
        %458 = vmatprep.subr.mxu0 0.0
        %459 = vmatpush1.msra.mxu0 0.0
        %460 = vmatprep.subr.mxu0 0.0
        %461 = vmatpush1.msra.mxu0 0.0
        %462 = vmatprep.subr.mxu0 0.0
        %463 = vmatpush1.msra.mxu0 0.0
        %464 = vmatprep.subr.mxu0 0.0
        %465 = vmatpush1.msra.mxu0 0.0
        %466 = vmatprep.subr.mxu0 0.0
        %467 = vmatpush1.msra.mxu0 0.0
        %468 = vmatprep.subr.mxu0 0.0
        %469 = vmatpush1.msra.mxu0 0.0
        %470 = vmatprep.subr.mxu0 0.0
        %471 = vmatpush1.msra.mxu0 0.0
        %472 = vmatprep.subr.mxu0 0.0
        %473 = vmatpush1.msra.mxu0 0.0
        %474 = vmatprep.subr.mxu0 0.0
        %475 = vmatpush1.msra.mxu0 0.0
        %476 = vmatprep.subr.mxu0 0.0
        %477 = vmatpush1.msra.mxu0 0.0
        %478 = vmatprep.subr.mxu0 0.0
        %479 = vmatpush1.msra.mxu0 0.0
        %480 = vmatprep.subr.mxu0 0.0
        %481 = vmatpush1.msra.mxu0 0.0
        %482 = vmatprep.subr.mxu0 0.0
        %483 = vmatpush1.msra.mxu0 0.0
        %484 = vmatprep.subr.mxu0 0.0
        %485 = vmatpush1.msra.mxu0 0.0
        %486 = vmatprep.subr.mxu0 0.0
        %487 = vmatpush1.msra.mxu0 0.0
        %488 = vmatprep.mubr.f32.mxu0 0.0
        %489 = vmatmul.mubr.f32.gmra.mrb[0].mxu0 %v344
        %v490 = vpop.f32.mrb[0].mxu0
        %v491 = vadd.f32 %v422, %v490
        %v492 = vpop.f32.mrb[0].mxu0
        %493 = vdwg.mxu0
        %494 = vst.msk [vmem:[%s325] sm:$0xff] %vm342, %v491
        %s495 = sand.u32 %s162, 1
        %s496 = scalar_lea.sflag [#allocation4], %s495
        %s497 = sand.u32 %s162, 1
        %s498 = smul.addr %s497, 8
        %s499 = scalar_lea.vmem [#allocation8], %s498
        %s500 = sand.u32 %s190, 1
        %s501 = scalar_lea.sflag [#allocation10], %s500
        %s502 = sand.u32 %s190, 1
        %s503 = smul.addr %s502, 8
        %s504 = scalar_lea.vmem [#allocation9], %s503
        // Predicated region
        $region53: #{tpu_custom_call.1} parent=39 // pred_check
          %p505 = pneg %p172
        $region54: #{tpu_custom_call.1} parent=39 // pred_check_branch
          %507 = sbr.rel (%p505) target = $region56
        $region55: #{tpu_custom_call.1} parent=39 // pred_region
          %s509 = ssub.s32 128, 128
          %510 = vsyncadd %s496, %s509
          %s511 = sadd.s32 %s33, %s32
          %s512 = smul.addr %s511, 128
          %s513 = scalar_lea.hbm %s5, %s512
          %s515 = sshll.u32 %s499, 4
          %s516 = int_to_ptr.vmem [resolvable:$true] %s515
          %518 = dma.vmem_to_hbm [thread:$0]  %s516, 128, %s513, %s496
        $region56: #{tpu_custom_call.1} parent=39 // pred_fallthru
          _
        // Predicated region
        $region57: #{tpu_custom_call.1} parent=39 // pred_check
          %p519 = pneg %p200
        $region58: #{tpu_custom_call.1} parent=39 // pred_check_branch
          %521 = sbr.rel (%p519) target = $region60
        $region59: #{tpu_custom_call.1} parent=39 // pred_region
          %s523 = ssub.s32 128, 128
          %524 = vsyncadd %s501, %s523
          %s525 = sadd.s32 %s33, %s32
          %s526 = smul.addr %s525, 128
          %s527 = scalar_lea.hbm %s6, %s526
          %s529 = sshll.u32 %s504, 4
          %s530 = int_to_ptr.vmem [resolvable:$true] %s529
          %532 = dma.vmem_to_hbm [thread:$0]  %s530, 128, %s527, %s501
        $region60: #{tpu_custom_call.1} parent=39 // pred_fallthru
          _
      $region40: #{tpu_custom_call.1} parent=5 // pred_fallthru
        _
      %p533 = scmp.le.s32.totalorder 2, %s23
      // Predicated region
      $region61: #{tpu_custom_call.1} parent=5 // pred_check
        %p534 = pneg %p533
      $region62: #{tpu_custom_call.1} parent=5 // pred_check_branch
        %536 = sbr.rel (%p534) target = $region64
      $region63: #{tpu_custom_call.1} parent=5 // pred_region
        %s537 = ssub.s32 %s23, 2
        // Predicated region
        $region65: #{tpu_custom_call.1} parent=63 // pred_check
          %p538 = pneg %p178
        $region66: #{tpu_custom_call.1} parent=63 // pred_check_branch
          %540 = sbr.rel (%p538) target = $region68
        $region67: #{tpu_custom_call.1} parent=63 // pred_region
          %s541 = sand.u32 %s163, 1
          %s542 = scalar_lea.sflag [#allocation4], %s541
          %s543 = sand.u32 %s163, 1
          %s544 = smul.addr %s543, 8
          %s545 = scalar_lea.vmem [#allocation8], %s544
          %546 = dma.done %s542, 128
        $region68: #{tpu_custom_call.1} parent=63 // pred_fallthru
          _
        // Predicated region
        $region69: #{tpu_custom_call.1} parent=63 // pred_check
          %p547 = pneg %p206
        $region70: #{tpu_custom_call.1} parent=63 // pred_check_branch
          %549 = sbr.rel (%p547) target = $region72
        $region71: #{tpu_custom_call.1} parent=63 // pred_region
          %s550 = sand.u32 %s191, 1
          %s551 = scalar_lea.sflag [#allocation10], %s550
          %s552 = sand.u32 %s191, 1
          %s553 = smul.addr %s552, 8
          %s554 = scalar_lea.vmem [#allocation9], %s553
          %555 = dma.done %s551, 128
        $region72: #{tpu_custom_call.1} parent=63 // pred_fallthru
          _
      $region64: #{tpu_custom_call.1} parent=5 // pred_fallthru
        _
    $region6: #{tpu_custom_call.1} parent=1 // loop_footer
      %s27 = sadd.s32 1, %s23
    $region7: #{tpu_custom_call.1} parent=1 // loop_footer_branch
      %22 = sbr.rel target = $region3
    $region8: #{tpu_custom_call.1} parent=1 // loop_exit
      _
    %556 = vsyncpa [#allocation3], 1
    %s557 = scalar_lea.sflag [#allocation3], 1
    %558 = vsyncpa %s557, 1
    %559 = vsyncpa [#allocation6], 1
    %560 = vsyncpa [#allocation4], 1
    %s561 = scalar_lea.sflag [#allocation4], 1
    %562 = vsyncpa %s561, 1
    %563 = vsyncpa [#allocation10], 1
    %s564 = scalar_lea.sflag [#allocation10], 1
    %565 = vsyncpa %s564, 1

</llo_original>
